<compile_context>
chip_gen: v7x
topology: tpu7x:2x2x1
jax: 0.10.0
libtpu: 0.0.40
codegen_flags: <defaults>
</compile_context>

<pallas_src>
import functools

import jax
import jax.numpy as jnp
from jax import lax
from jax.experimental import pallas as pl
from jax.experimental.pallas import tpu as pltpu


def _make_lstm_kernel(num_layers: int, hidden: int, seq_len: int, batch: int):
    """Builds a kernel closure for fixed (L, H, T, B)."""
    L, H, T, B = num_layers, hidden, seq_len, batch

    def kernel(*refs):
        # ref layout (inputs, then output, then scratch):
        #   x2d    (T*B, F)   bf16
        #   h0     (L, B, H)  f32
        #   c0     (L, B, H)  f32
        #   w0T    (F, 4H)    bf16   layer-0 W_ih^T
        #   whh0T  (H, 4H)    bf16   layer-0 W_hh^T
        #   b0     (1, 4H)    f32    layer-0 b_ih + b_hh
        #   per layer l in 1..L-1:  wcatT_l (2H, 4H) bf16, b_l (1, 4H) f32
        #   gamma (1, H), beta (1, H), woutT (H, 2), bout (1, 2)   all f32
        #   out    (B, 2)     f32
        #   gx     (T*B, 4H)  f32    VMEM scratch (hoisted layer-0 input projection)
        n_in = 6 + 2 * (L - 1) + 4
        in_refs = refs[:n_in]
        out_ref = refs[n_in]
        gx_ref = refs[n_in + 1]

        x2d_ref, h0_ref, c0_ref, w0_ref, whh0_ref, b0_ref = in_refs[:6]
        layer_refs = in_refs[6:6 + 2 * (L - 1)]
        gamma_ref, beta_ref, woutT_ref, bout_ref = in_refs[6 + 2 * (L - 1):]

        # ---- hoisted layer-0 input projection: one big-M matmul instead of T M=B ones.
        gx_ref[...] = (
            jnp.dot(x2d_ref[...], w0_ref[...], preferred_element_type=jnp.float32)
            + b0_ref[...]
        )

        # Small per-layer weights stay resident as values (tiny at H=32).
        # TODO(synk): for H >= 128 re-read these from the refs inside the loop instead
        # of holding them live across the whole recurrence (vreg pressure).
        whh0 = whh0_ref[...]
        wcat = [layer_refs[2 * i][...] for i in range(L - 1)]
        bias = [layer_refs[2 * i + 1][...] for i in range(L - 1)]

        def cell(gates, c_prev):
            # PyTorch gate order along the 4H lane axis: i, f, g, o.
            # TODO(synk): 32-lane gate slices cost a few XLU extracts; a fully
            # lane-aligned per-gate weight layout would 4x the MXU pushes, so the
            # fused (B,4H) matmul + slices wins at these shapes (XLU has slack).
            i_g = jax.nn.sigmoid(gates[:, 0 * H:1 * H])
            f_g = jax.nn.sigmoid(gates[:, 1 * H:2 * H])
            g_g = jnp.tanh(gates[:, 2 * H:3 * H])
            o_g = jax.nn.sigmoid(gates[:, 3 * H:4 * H])
            c_new = f_g * c_prev + i_g * g_g
            h_new = o_g * jnp.tanh(c_new)
            return h_new, c_new

        # Flat per-layer (B, H) state; no (L, B, H) re-stacking per step.
        hs = [h0_ref[l] for l in range(L)]
        cs = [c0_ref[l] for l in range(L)]

        # Time recurrence, fully unrolled at trace time (T small & static) so the
        # scheduler can interleave MXU / EUP / VPU work across timesteps.
        for t in range(T):
            # layer 0: x-projection already hoisted -> only the hidden matmul per step.
            gates0 = gx_ref[pl.ds(t * B, B), :] + jnp.dot(
                hs[0].astype(jnp.bfloat16), whh0,
                preferred_element_type=jnp.float32)
            hs[0], cs[0] = cell(gates0, cs[0])

            inp = hs[0]
            for l in range(1, L):
                # fused [x ; h] @ [W_ih^T ; W_hh^T]  (one matmul instead of two)
                xh = jnp.concatenate(
                    [inp.astype(jnp.bfloat16), hs[l].astype(jnp.bfloat16)], axis=-1)
                gates = jnp.dot(xh, wcat[l - 1],
                                preferred_element_type=jnp.float32) + bias[l - 1]
                hs[l], cs[l] = cell(gates, cs[l])
                inp = hs[l]
            # TODO(synk): nn.LSTM(dropout=0.2) applies dropout between layers only in
            # training mode; eval-mode (no-dropout) semantics implemented here.

        # Head on the last time step of the last layer: LayerNorm -> tanh -> Linear(H,2)
        last = hs[L - 1]                                       # (B, H) f32
        mean = jnp.mean(last, axis=-1, keepdims=True)
        xc = last - mean
        var = jnp.mean(xc * xc, axis=-1, keepdims=True)
        ln = xc * lax.rsqrt(var + 1e-5) * gamma_ref[...] + beta_ref[...]
        act = jnp.tanh(ln)
        out_ref[...] = (jnp.dot(act, woutT_ref[...],
                                preferred_element_type=jnp.float32)
                        + bout_ref[...])

    return kernel


def init_params(key, feature_size, hidden_size, num_layers):
    """Deterministic synthetic parameters matching nn.LSTM / LayerNorm / Linear shapes."""
    H = hidden_size
    params = {"layers": []}
    k = key
    for l in range(num_layers):
        in_l = feature_size if l == 0 else H
        k, k1, k2, k3, k4 = jax.random.split(k, 5)
        bound = 1.0 / jnp.sqrt(H)
        w_ih = jax.random.uniform(k1, (4 * H, in_l), jnp.float32, -bound, bound)
        w_hh = jax.random.uniform(k2, (4 * H, H), jnp.float32, -bound, bound)
        b_ih = jax.random.uniform(k3, (4 * H,), jnp.float32, -bound, bound)
        b_hh = jax.random.uniform(k4, (4 * H,), jnp.float32, -bound, bound)
        params["layers"].append((w_ih, w_hh, b_ih, b_hh))
    params["gamma"] = jnp.ones((H,), jnp.float32)     # LayerNorm defaults
    params["beta"] = jnp.zeros((H,), jnp.float32)
    k, k1, k2 = jax.random.split(k, 3)
    bound = 1.0 / jnp.sqrt(H)
    params["w_out"] = jax.random.uniform(k1, (2, H), jnp.float32, -bound, bound)
    params["b_out"] = jax.random.uniform(k2, (2,), jnp.float32, -bound, bound)
    return params


@functools.partial(jax.jit, static_argnames=("hidden_size", "num_layers"))
def mylstm_forward(x, h0, c0, params, *, hidden_size, num_layers):
    B, T, F = x.shape
    H = hidden_size
    bf16 = jnp.bfloat16

    # PyTorch x.view(T, B, -1) is a reshape; flattening it to (T*B, F) equals
    # x.reshape(-1, F) in row-major order.
    x2d = x.reshape(T * B, F).astype(bf16)

    layers = params["layers"]
    w_ih0, w_hh0, b_ih0, b_hh0 = layers[0]
    args = [
        x2d, h0, c0,
        jnp.transpose(w_ih0).astype(bf16),                      # (F, 4H)
        jnp.transpose(w_hh0).astype(bf16),                      # (H, 4H)
        (b_ih0 + b_hh0).reshape(1, -1).astype(jnp.float32),     # (1, 4H)
    ]
    for l in range(1, num_layers):
        w_ih, w_hh, b_ih, b_hh = layers[l]
        wcat = jnp.concatenate([jnp.transpose(w_ih), jnp.transpose(w_hh)], axis=0)
        args.append(wcat.astype(bf16))                          # (2H, 4H)
        args.append((b_ih + b_hh).reshape(1, -1).astype(jnp.float32))
    args.append(params["gamma"].reshape(1, -1).astype(jnp.float32))
    args.append(params["beta"].reshape(1, -1).astype(jnp.float32))
    args.append(jnp.transpose(params["w_out"]).astype(jnp.float32))   # (H, 2)
    args.append(params["b_out"].reshape(1, -1).astype(jnp.float32))   # (1, 2)

    kernel = _make_lstm_kernel(num_layers, H, T, B)
    # TODO(synk): for long sequences, stream x with a time-chunk grid (BlockSpec over T)
    # instead of keeping the whole (T*B, 4H) projection resident in VMEM (v7x: 64 MiB).
    out = pl.pallas_call(
        kernel,
        out_shape=jax.ShapeDtypeStruct((B, 2), jnp.float32),
        in_specs=[pl.BlockSpec(memory_space=pltpu.MemorySpace.VMEM)] * len(args),
        out_specs=pl.BlockSpec(memory_space=pltpu.MemorySpace.VMEM),
        scratch_shapes=[pltpu.VMEM((T * B, 4 * H), jnp.float32)],
    )(*args)
    return out


def _reference_forward(x, h0, c0, params, hidden_size, num_layers):
    """Pure-JAX reference mirroring the kernel numerics (bf16 MXU operands, f32 state)."""
    B, T, F = x.shape
    H = hidden_size
    bf16 = jnp.bfloat16
    xs = jnp.reshape(x, (T, B, F))
    h = [h0[l] for l in range(num_layers)]
    c = [c0[l] for l in range(num_layers)]
    last = None
    for t in range(T):
        inp = xs[t]
        for l in range(num_layers):
            w_ih, w_hh, b_ih, b_hh = params["layers"][l]
            gates = (jnp.dot(inp.astype(bf16), w_ih.T.astype(bf16),
                             preferred_element_type=jnp.float32)
                     + jnp.dot(h[l].astype(bf16), w_hh.T.astype(bf16),
                               preferred_element_type=jnp.float32)
                     + b_ih + b_hh)
            i_g = jax.nn.sigmoid(gates[:, 0 * H:1 * H])
            f_g = jax.nn.sigmoid(gates[:, 1 * H:2 * H])
            g_g = jnp.tanh(gates[:, 2 * H:3 * H])
            o_g = jax.nn.sigmoid(gates[:, 3 * H:4 * H])
            c[l] = f_g * c[l] + i_g * g_g
            h[l] = o_g * jnp.tanh(c[l])
            inp = h[l]
        last = h[num_layers - 1]
    mean = jnp.mean(last, axis=-1, keepdims=True)
    var = jnp.mean((last - mean) ** 2, axis=-1, keepdims=True)
    ln = (last - mean) / jnp.sqrt(var + 1e-5) * params["gamma"] + params["beta"]
    act = jnp.tanh(ln)
    return act @ params["w_out"].T + params["b_out"]


if __name__ == "__main__":
    # Small shapes consistent with the module's forward
    B, T = 2, 8
    feature_size, hidden_size, num_layers = 16, 32, 2

    key = jax.random.PRNGKey(0)
    k_x, k_h, k_c, k_p = jax.random.split(key, 4)

    x = jax.random.normal(k_x, (B, T, feature_size), jnp.float32)
    # PyTorch forward draws h_state/c_state from randn each call; drawn deterministically.
    h0 = jax.random.normal(k_h, (num_layers, B, hidden_size), jnp.float32)
    c0 = jax.random.normal(k_c, (num_layers, B, hidden_size), jnp.float32)
    params = init_params(k_p, feature_size, hidden_size, num_layers)

    out = mylstm_forward(x, h0, c0, params,
                         hidden_size=hidden_size, num_layers=num_layers)
    out = jax.block_until_ready(out)

    ref = _reference_forward(x, h0, c0, params, hidden_size, num_layers)
    assert out.shape == (B, 2)
    assert jnp.allclose(out, ref, atol=1e-2, rtol=1e-2), (
        f"max abs err {jnp.max(jnp.abs(out - ref))}")

    print("KERNEL_OK")
</pallas_src>

<mosaic_0001>
module attributes {stable_mosaic.version = 11 : i64} {
  func.func @kernel(%arg0: memref<16x16xbf16, #tpu.memory_space<vmem>>, %arg1: memref<2x2x32xf32, #tpu.memory_space<vmem>>, %arg2: memref<2x2x32xf32, #tpu.memory_space<vmem>>, %arg3: memref<16x128xbf16, #tpu.memory_space<vmem>>, %arg4: memref<32x128xbf16, #tpu.memory_space<vmem>>, %arg5: memref<1x128xf32, #tpu.memory_space<vmem>>, %arg6: memref<64x128xbf16, #tpu.memory_space<vmem>>, %arg7: memref<1x128xf32, #tpu.memory_space<vmem>>, %arg8: memref<1x32xf32, #tpu.memory_space<vmem>>, %arg9: memref<1x32xf32, #tpu.memory_space<vmem>>, %arg10: memref<32x2xf32, #tpu.memory_space<vmem>>, %arg11: memref<1x2xf32, #tpu.memory_space<vmem>>, %arg12: memref<2x2xf32, #tpu.memory_space<vmem>>, %arg13: memref<16x128xf32, #tpu.memory_space<vmem>>) attributes {dimension_semantics = [], scalar_prefetch = 0 : i64, scratch_operands = 1 : i64, tpu.core_type = #tpu.core_type<tc>} {
    %c0 = arith.constant 0 : index
    %c0_0 = arith.constant 0 : index
    %0 = vector.load %arg0[%c0, %c0_0] : memref<16x16xbf16, #tpu.memory_space<vmem>>, vector<16x16xbf16>
    %c0_1 = arith.constant 0 : index
    %c0_2 = arith.constant 0 : index
    %1 = vector.load %arg3[%c0_1, %c0_2] : memref<16x128xbf16, #tpu.memory_space<vmem>>, vector<16x128xbf16>
    %cst = arith.constant dense<0.000000e+00> : vector<16x128xf32>
    %2 = tpu.matmul %0, %1, %cst {dimension_numbers = #tpu.dot_dimension_numbers<[1], [0], [0], [1], [0, 0, 1, 1], [], []>} : vector<16x16xbf16>, vector<16x128xbf16>, vector<16x128xf32> -> vector<16x128xf32>
    %c0_3 = arith.constant 0 : index
    %c0_4 = arith.constant 0 : index
    %3 = vector.load %arg5[%c0_3, %c0_4] : memref<1x128xf32, #tpu.memory_space<vmem>>, vector<1x128xf32>
    %4 = vector.broadcast %3 : vector<1x128xf32> to vector<16x128xf32>
    %5 = arith.addf %2, %4 : vector<16x128xf32>
    %c0_5 = arith.constant 0 : index
    %c0_6 = arith.constant 0 : index
    %6 = vector.load %arg13[%c0_5, %c0_6] : memref<16x128xf32, #tpu.memory_space<vmem>>, vector<16x128xf32>
    tpu.vector_store %arg13[%c0_5, %c0_6], %5 {strides = array<i32>} : memref<16x128xf32, #tpu.memory_space<vmem>>, vector<16x128xf32>,
    %c0_7 = arith.constant 0 : index
    %c0_8 = arith.constant 0 : index
    %7 = vector.load %arg4[%c0_7, %c0_8] : memref<32x128xbf16, #tpu.memory_space<vmem>>, vector<32x128xbf16>
    %c0_9 = arith.constant 0 : index
    %c0_10 = arith.constant 0 : index
    %8 = vector.load %arg6[%c0_9, %c0_10] : memref<64x128xbf16, #tpu.memory_space<vmem>>, vector<64x128xbf16>
    %c0_11 = arith.constant 0 : index
    %c0_12 = arith.constant 0 : index
    %9 = vector.load %arg7[%c0_11, %c0_12] : memref<1x128xf32, #tpu.memory_space<vmem>>, vector<1x128xf32>
    %c0_13 = arith.constant 0 : index
    %c0_14 = arith.constant 0 : index
    %c0_15 = arith.constant 0 : index
    %10 = vector.load %arg1[%c0_13, %c0_14, %c0_15] : memref<2x2x32xf32, #tpu.memory_space<vmem>>, vector<1x2x32xf32>
    %11 = vector.shape_cast %10 : vector<1x2x32xf32> to vector<2x32xf32>
    %c1 = arith.constant 1 : index
    %c0_16 = arith.constant 0 : index
    %c0_17 = arith.constant 0 : index
    %12 = vector.load %arg1[%c1, %c0_16, %c0_17] : memref<2x2x32xf32, #tpu.memory_space<vmem>>, vector<1x2x32xf32>
    %13 = vector.shape_cast %12 : vector<1x2x32xf32> to vector<2x32xf32>
    %c0_18 = arith.constant 0 : index
    %c0_19 = arith.constant 0 : index
    %c0_20 = arith.constant 0 : index
    %14 = vector.load %arg2[%c0_18, %c0_19, %c0_20] : memref<2x2x32xf32, #tpu.memory_space<vmem>>, vector<1x2x32xf32>
    %15 = vector.shape_cast %14 : vector<1x2x32xf32> to vector<2x32xf32>
    %c1_21 = arith.constant 1 : index
    %c0_22 = arith.constant 0 : index
    %c0_23 = arith.constant 0 : index
    %16 = vector.load %arg2[%c1_21, %c0_22, %c0_23] : memref<2x2x32xf32, #tpu.memory_space<vmem>>, vector<1x2x32xf32>
    %17 = vector.shape_cast %16 : vector<1x2x32xf32> to vector<2x32xf32>
    %c0_24 = arith.constant 0 : index
    %c0_25 = arith.constant 0 : index
    %18 = vector.load %arg13[%c0_24, %c0_25] : memref<16x128xf32, #tpu.memory_space<vmem>>, vector<2x128xf32>
    %19 = arith.truncf %11 : vector<2x32xf32> to vector<2x32xbf16>
    %cst_26 = arith.constant dense<0.000000e+00> : vector<2x128xf32>
    %20 = tpu.matmul %19, %7, %cst_26 {dimension_numbers = #tpu.dot_dimension_numbers<[1], [0], [0], [1], [0, 0, 1, 1], [], []>} : vector<2x32xbf16>, vector<32x128xbf16>, vector<2x128xf32> -> vector<2x128xf32>
    %21 = arith.addf %18, %20 : vector<2x128xf32>
    %22 = vector.extract_strided_slice %21 {offsets = [0, 0], sizes = [2, 32], strides = [1, 1]} : vector<2x128xf32> to vector<2x32xf32>
    %23 = arith.negf %22 : vector<2x32xf32>
    %24 = math.exp %23 : vector<2x32xf32>
    %cst_27 = arith.constant 1.000000e+00 : f32
    %25 = vector.broadcast %cst_27 : f32 to vector<2x32xf32>
    %26 = arith.addf %25, %24 : vector<2x32xf32>
    %27 = arith.divf %25, %26 : vector<2x32xf32>
    %28 = vector.extract_strided_slice %21 {offsets = [0, 32], sizes = [2, 32], strides = [1, 1]} : vector<2x128xf32> to vector<2x32xf32>
    %29 = arith.negf %28 : vector<2x32xf32>
    %30 = math.exp %29 : vector<2x32xf32>
    %cst_28 = arith.constant 1.000000e+00 : f32
    %31 = vector.broadcast %cst_28 : f32 to vector<2x32xf32>
    %32 = arith.addf %31, %30 : vector<2x32xf32>
    %33 = arith.divf %31, %32 : vector<2x32xf32>
    %34 = vector.extract_strided_slice %21 {offsets = [0, 64], sizes = [2, 32], strides = [1, 1]} : vector<2x128xf32> to vector<2x32xf32>
    %35 = math.tanh %34 : vector<2x32xf32>
    %36 = vector.extract_strided_slice %21 {offsets = [0, 96], sizes = [2, 32], strides = [1, 1]} : vector<2x128xf32> to vector<2x32xf32>
    %37 = arith.negf %36 : vector<2x32xf32>
    %38 = math.exp %37 : vector<2x32xf32>
    %cst_29 = arith.constant 1.000000e+00 : f32
    %39 = vector.broadcast %cst_29 : f32 to vector<2x32xf32>
    %40 = arith.addf %39, %38 : vector<2x32xf32>
    %41 = arith.divf %39, %40 : vector<2x32xf32>
    %42 = arith.mulf %33, %15 : vector<2x32xf32>
    %43 = arith.mulf %27, %35 : vector<2x32xf32>
    %44 = arith.addf %42, %43 : vector<2x32xf32>
    %45 = math.tanh %44 : vector<2x32xf32>
    %46 = arith.mulf %41, %45 : vector<2x32xf32>
    %47 = arith.truncf %46 : vector<2x32xf32> to vector<2x32xbf16>
    %48 = arith.truncf %13 : vector<2x32xf32> to vector<2x32xbf16>
    %49 = tpu.concatenate %47, %48 in 1 : vector<2x32xbf16>, vector<2x32xbf16> -> vector<2x64xbf16>
    %cst_30 = arith.constant dense<0.000000e+00> : vector<2x128xf32>
    %50 = tpu.matmul %49, %8, %cst_30 {dimension_numbers = #tpu.dot_dimension_numbers<[1], [0], [0], [1], [0, 0, 1, 1], [], []>} : vector<2x64xbf16>, vector<64x128xbf16>, vector<2x128xf32> -> vector<2x128xf32>
    %51 = vector.broadcast %9 : vector<1x128xf32> to vector<2x128xf32>
    %52 = arith.addf %50, %51 : vector<2x128xf32>
    %53 = vector.extract_strided_slice %52 {offsets = [0, 0], sizes = [2, 32], strides = [1, 1]} : vector<2x128xf32> to vector<2x32xf32>
    %54 = arith.negf %53 : vector<2x32xf32>
    %55 = math.exp %54 : vector<2x32xf32>
    %cst_31 = arith.constant 1.000000e+00 : f32
    %56 = vector.broadcast %cst_31 : f32 to vector<2x32xf32>
    %57 = arith.addf %56, %55 : vector<2x32xf32>
    %58 = arith.divf %56, %57 : vector<2x32xf32>
    %59 = vector.extract_strided_slice %52 {offsets = [0, 32], sizes = [2, 32], strides = [1, 1]} : vector<2x128xf32> to vector<2x32xf32>
    %60 = arith.negf %59 : vector<2x32xf32>
    %61 = math.exp %60 : vector<2x32xf32>
    %cst_32 = arith.constant 1.000000e+00 : f32
    %62 = vector.broadcast %cst_32 : f32 to vector<2x32xf32>
    %63 = arith.addf %62, %61 : vector<2x32xf32>
    %64 = arith.divf %62, %63 : vector<2x32xf32>
    %65 = vector.extract_strided_slice %52 {offsets = [0, 64], sizes = [2, 32], strides = [1, 1]} : vector<2x128xf32> to vector<2x32xf32>
    %66 = math.tanh %65 : vector<2x32xf32>
    %67 = vector.extract_strided_slice %52 {offsets = [0, 96], sizes = [2, 32], strides = [1, 1]} : vector<2x128xf32> to vector<2x32xf32>
    %68 = arith.negf %67 : vector<2x32xf32>
    %69 = math.exp %68 : vector<2x32xf32>
    %cst_33 = arith.constant 1.000000e+00 : f32
    %70 = vector.broadcast %cst_33 : f32 to vector<2x32xf32>
    %71 = arith.addf %70, %69 : vector<2x32xf32>
    %72 = arith.divf %70, %71 : vector<2x32xf32>
    %73 = arith.mulf %64, %17 : vector<2x32xf32>
    %74 = arith.mulf %58, %66 : vector<2x32xf32>
    %75 = arith.addf %73, %74 : vector<2x32xf32>
    %76 = math.tanh %75 : vector<2x32xf32>
    %77 = arith.mulf %72, %76 : vector<2x32xf32>
    %c2 = arith.constant 2 : index
    %c0_34 = arith.constant 0 : index
    %78 = vector.load %arg13[%c2, %c0_34] : memref<16x128xf32, #tpu.memory_space<vmem>>, vector<2x128xf32>
    %79 = arith.truncf %46 : vector<2x32xf32> to vector<2x32xbf16>
    %cst_35 = arith.constant dense<0.000000e+00> : vector<2x128xf32>
    %80 = tpu.matmul %79, %7, %cst_35 {dimension_numbers = #tpu.dot_dimension_numbers<[1], [0], [0], [1], [0, 0, 1, 1], [], []>} : vector<2x32xbf16>, vector<32x128xbf16>, vector<2x128xf32> -> vector<2x128xf32>
    %81 = arith.addf %78, %80 : vector<2x128xf32>
    %82 = vector.extract_strided_slice %81 {offsets = [0, 0], sizes = [2, 32], strides = [1, 1]} : vector<2x128xf32> to vector<2x32xf32>
    %83 = arith.negf %82 : vector<2x32xf32>
    %84 = math.exp %83 : vector<2x32xf32>
    %cst_36 = arith.constant 1.000000e+00 : f32
    %85 = vector.broadcast %cst_36 : f32 to vector<2x32xf32>
    %86 = arith.addf %85, %84 : vector<2x32xf32>
    %87 = arith.divf %85, %86 : vector<2x32xf32>
    %88 = vector.extract_strided_slice %81 {offsets = [0, 32], sizes = [2, 32], strides = [1, 1]} : vector<2x128xf32> to vector<2x32xf32>
    %89 = arith.negf %88 : vector<2x32xf32>
    %90 = math.exp %89 : vector<2x32xf32>
    %cst_37 = arith.constant 1.000000e+00 : f32
    %91 = vector.broadcast %cst_37 : f32 to vector<2x32xf32>
    %92 = arith.addf %91, %90 : vector<2x32xf32>
    %93 = arith.divf %91, %92 : vector<2x32xf32>
    %94 = vector.extract_strided_slice %81 {offsets = [0, 64], sizes = [2, 32], strides = [1, 1]} : vector<2x128xf32> to vector<2x32xf32>
    %95 = math.tanh %94 : vector<2x32xf32>
    %96 = vector.extract_strided_slice %81 {offsets = [0, 96], sizes = [2, 32], strides = [1, 1]} : vector<2x128xf32> to vector<2x32xf32>
    %97 = arith.negf %96 : vector<2x32xf32>
    %98 = math.exp %97 : vector<2x32xf32>
    %cst_38 = arith.constant 1.000000e+00 : f32
    %99 = vector.broadcast %cst_38 : f32 to vector<2x32xf32>
    %100 = arith.addf %99, %98 : vector<2x32xf32>
    %101 = arith.divf %99, %100 : vector<2x32xf32>
    %102 = arith.mulf %93, %44 : vector<2x32xf32>
    %103 = arith.mulf %87, %95 : vector<2x32xf32>
    %104 = arith.addf %102, %103 : vector<2x32xf32>
    %105 = math.tanh %104 : vector<2x32xf32>
    %106 = arith.mulf %101, %105 : vector<2x32xf32>
    %107 = arith.truncf %106 : vector<2x32xf32> to vector<2x32xbf16>
    %108 = arith.truncf %77 : vector<2x32xf32> to vector<2x32xbf16>
    %109 = tpu.concatenate %107, %108 in 1 : vector<2x32xbf16>, vector<2x32xbf16> -> vector<2x64xbf16>
    %cst_39 = arith.constant dense<0.000000e+00> : vector<2x128xf32>
    %110 = tpu.matmul %109, %8, %cst_39 {dimension_numbers = #tpu.dot_dimension_numbers<[1], [0], [0], [1], [0, 0, 1, 1], [], []>} : vector<2x64xbf16>, vector<64x128xbf16>, vector<2x128xf32> -> vector<2x128xf32>
    %111 = vector.broadcast %9 : vector<1x128xf32> to vector<2x128xf32>
    %112 = arith.addf %110, %111 : vector<2x128xf32>
    %113 = vector.extract_strided_slice %112 {offsets = [0, 0], sizes = [2, 32], strides = [1, 1]} : vector<2x128xf32> to vector<2x32xf32>
    %114 = arith.negf %113 : vector<2x32xf32>
    %115 = math.exp %114 : vector<2x32xf32>
    %cst_40 = arith.constant 1.000000e+00 : f32
    %116 = vector.broadcast %cst_40 : f32 to vector<2x32xf32>
    %117 = arith.addf %116, %115 : vector<2x32xf32>
    %118 = arith.divf %116, %117 : vector<2x32xf32>
    %119 = vector.extract_strided_slice %112 {offsets = [0, 32], sizes = [2, 32], strides = [1, 1]} : vector<2x128xf32> to vector<2x32xf32>
    %120 = arith.negf %119 : vector<2x32xf32>
    %121 = math.exp %120 : vector<2x32xf32>
    %cst_41 = arith.constant 1.000000e+00 : f32
    %122 = vector.broadcast %cst_41 : f32 to vector<2x32xf32>
    %123 = arith.addf %122, %121 : vector<2x32xf32>
    %124 = arith.divf %122, %123 : vector<2x32xf32>
    %125 = vector.extract_strided_slice %112 {offsets = [0, 64], sizes = [2, 32], strides = [1, 1]} : vector<2x128xf32> to vector<2x32xf32>
    %126 = math.tanh %125 : vector<2x32xf32>
    %127 = vector.extract_strided_slice %112 {offsets = [0, 96], sizes = [2, 32], strides = [1, 1]} : vector<2x128xf32> to vector<2x32xf32>
    %128 = arith.negf %127 : vector<2x32xf32>
    %129 = math.exp %128 : vector<2x32xf32>
    %cst_42 = arith.constant 1.000000e+00 : f32
    %130 = vector.broadcast %cst_42 : f32 to vector<2x32xf32>
    %131 = arith.addf %130, %129 : vector<2x32xf32>
    %132 = arith.divf %130, %131 : vector<2x32xf32>
    %133 = arith.mulf %124, %75 : vector<2x32xf32>
    %134 = arith.mulf %118, %126 : vector<2x32xf32>
    %135 = arith.addf %133, %134 : vector<2x32xf32>
    %136 = math.tanh %135 : vector<2x32xf32>
    %137 = arith.mulf %132, %136 : vector<2x32xf32>
    %c4 = arith.constant 4 : index
    %c0_43 = arith.constant 0 : index
    %138 = vector.load %arg13[%c4, %c0_43] : memref<16x128xf32, #tpu.memory_space<vmem>>, vector<2x128xf32>
    %139 = arith.truncf %106 : vector<2x32xf32> to vector<2x32xbf16>
    %cst_44 = arith.constant dense<0.000000e+00> : vector<2x128xf32>
    %140 = tpu.matmul %139, %7, %cst_44 {dimension_numbers = #tpu.dot_dimension_numbers<[1], [0], [0], [1], [0, 0, 1, 1], [], []>} : vector<2x32xbf16>, vector<32x128xbf16>, vector<2x128xf32> -> vector<2x128xf32>
    %141 = arith.addf %138, %140 : vector<2x128xf32>
    %142 = vector.extract_strided_slice %141 {offsets = [0, 0], sizes = [2, 32], strides = [1, 1]} : vector<2x128xf32> to vector<2x32xf32>
    %143 = arith.negf %142 : vector<2x32xf32>
    %144 = math.exp %143 : vector<2x32xf32>
    %cst_45 = arith.constant 1.000000e+00 : f32
    %145 = vector.broadcast %cst_45 : f32 to vector<2x32xf32>
    %146 = arith.addf %145, %144 : vector<2x32xf32>
    %147 = arith.divf %145, %146 : vector<2x32xf32>
    %148 = vector.extract_strided_slice %141 {offsets = [0, 32], sizes = [2, 32], strides = [1, 1]} : vector<2x128xf32> to vector<2x32xf32>
    %149 = arith.negf %148 : vector<2x32xf32>
    %150 = math.exp %149 : vector<2x32xf32>
    %cst_46 = arith.constant 1.000000e+00 : f32
    %151 = vector.broadcast %cst_46 : f32 to vector<2x32xf32>
    %152 = arith.addf %151, %150 : vector<2x32xf32>
    %153 = arith.divf %151, %152 : vector<2x32xf32>
    %154 = vector.extract_strided_slice %141 {offsets = [0, 64], sizes = [2, 32], strides = [1, 1]} : vector<2x128xf32> to vector<2x32xf32>
    %155 = math.tanh %154 : vector<2x32xf32>
    %156 = vector.extract_strided_slice %141 {offsets = [0, 96], sizes = [2, 32], strides = [1, 1]} : vector<2x128xf32> to vector<2x32xf32>
    %157 = arith.negf %156 : vector<2x32xf32>
    %158 = math.exp %157 : vector<2x32xf32>
    %cst_47 = arith.constant 1.000000e+00 : f32
    %159 = vector.broadcast %cst_47 : f32 to vector<2x32xf32>
    %160 = arith.addf %159, %158 : vector<2x32xf32>
    %161 = arith.divf %159, %160 : vector<2x32xf32>
    %162 = arith.mulf %153, %104 : vector<2x32xf32>
    %163 = arith.mulf %147, %155 : vector<2x32xf32>
    %164 = arith.addf %162, %163 : vector<2x32xf32>
    %165 = math.tanh %164 : vector<2x32xf32>
    %166 = arith.mulf %161, %165 : vector<2x32xf32>
    %167 = arith.truncf %166 : vector<2x32xf32> to vector<2x32xbf16>
    %168 = arith.truncf %137 : vector<2x32xf32> to vector<2x32xbf16>
    %169 = tpu.concatenate %167, %168 in 1 : vector<2x32xbf16>, vector<2x32xbf16> -> vector<2x64xbf16>
    %cst_48 = arith.constant dense<0.000000e+00> : vector<2x128xf32>
    %170 = tpu.matmul %169, %8, %cst_48 {dimension_numbers = #tpu.dot_dimension_numbers<[1], [0], [0], [1], [0, 0, 1, 1], [], []>} : vector<2x64xbf16>, vector<64x128xbf16>, vector<2x128xf32> -> vector<2x128xf32>
    %171 = vector.broadcast %9 : vector<1x128xf32> to vector<2x128xf32>
    %172 = arith.addf %170, %171 : vector<2x128xf32>
    %173 = vector.extract_strided_slice %172 {offsets = [0, 0], sizes = [2, 32], strides = [1, 1]} : vector<2x128xf32> to vector<2x32xf32>
    %174 = arith.negf %173 : vector<2x32xf32>
    %175 = math.exp %174 : vector<2x32xf32>
    %cst_49 = arith.constant 1.000000e+00 : f32
    %176 = vector.broadcast %cst_49 : f32 to vector<2x32xf32>
    %177 = arith.addf %176, %175 : vector<2x32xf32>
    %178 = arith.divf %176, %177 : vector<2x32xf32>
    %179 = vector.extract_strided_slice %172 {offsets = [0, 32], sizes = [2, 32], strides = [1, 1]} : vector<2x128xf32> to vector<2x32xf32>
    %180 = arith.negf %179 : vector<2x32xf32>
    %181 = math.exp %180 : vector<2x32xf32>
    %cst_50 = arith.constant 1.000000e+00 : f32
    %182 = vector.broadcast %cst_50 : f32 to vector<2x32xf32>
    %183 = arith.addf %182, %181 : vector<2x32xf32>
    %184 = arith.divf %182, %183 : vector<2x32xf32>
    %185 = vector.extract_strided_slice %172 {offsets = [0, 64], sizes = [2, 32], strides = [1, 1]} : vector<2x128xf32> to vector<2x32xf32>
    %186 = math.tanh %185 : vector<2x32xf32>
    %187 = vector.extract_strided_slice %172 {offsets = [0, 96], sizes = [2, 32], strides = [1, 1]} : vector<2x128xf32> to vector<2x32xf32>
    %188 = arith.negf %187 : vector<2x32xf32>
    %189 = math.exp %188 : vector<2x32xf32>
    %cst_51 = arith.constant 1.000000e+00 : f32
    %190 = vector.broadcast %cst_51 : f32 to vector<2x32xf32>
    %191 = arith.addf %190, %189 : vector<2x32xf32>
    %192 = arith.divf %190, %191 : vector<2x32xf32>
    %193 = arith.mulf %184, %135 : vector<2x32xf32>
    %194 = arith.mulf %178, %186 : vector<2x32xf32>
    %195 = arith.addf %193, %194 : vector<2x32xf32>
    %196 = math.tanh %195 : vector<2x32xf32>
    %197 = arith.mulf %192, %196 : vector<2x32xf32>
    %c6 = arith.constant 6 : index
    %c0_52 = arith.constant 0 : index
    %198 = vector.load %arg13[%c6, %c0_52] : memref<16x128xf32, #tpu.memory_space<vmem>>, vector<2x128xf32>
    %199 = arith.truncf %166 : vector<2x32xf32> to vector<2x32xbf16>
    %cst_53 = arith.constant dense<0.000000e+00> : vector<2x128xf32>
    %200 = tpu.matmul %199, %7, %cst_53 {dimension_numbers = #tpu.dot_dimension_numbers<[1], [0], [0], [1], [0, 0, 1, 1], [], []>} : vector<2x32xbf16>, vector<32x128xbf16>, vector<2x128xf32> -> vector<2x128xf32>
    %201 = arith.addf %198, %200 : vector<2x128xf32>
    %202 = vector.extract_strided_slice %201 {offsets = [0, 0], sizes = [2, 32], strides = [1, 1]} : vector<2x128xf32> to vector<2x32xf32>
    %203 = arith.negf %202 : vector<2x32xf32>
    %204 = math.exp %203 : vector<2x32xf32>
    %cst_54 = arith.constant 1.000000e+00 : f32
    %205 = vector.broadcast %cst_54 : f32 to vector<2x32xf32>
    %206 = arith.addf %205, %204 : vector<2x32xf32>
    %207 = arith.divf %205, %206 : vector<2x32xf32>
    %208 = vector.extract_strided_slice %201 {offsets = [0, 32], sizes = [2, 32], strides = [1, 1]} : vector<2x128xf32> to vector<2x32xf32>
    %209 = arith.negf %208 : vector<2x32xf32>
    %210 = math.exp %209 : vector<2x32xf32>
    %cst_55 = arith.constant 1.000000e+00 : f32
    %211 = vector.broadcast %cst_55 : f32 to vector<2x32xf32>
    %212 = arith.addf %211, %210 : vector<2x32xf32>
    %213 = arith.divf %211, %212 : vector<2x32xf32>
    %214 = vector.extract_strided_slice %201 {offsets = [0, 64], sizes = [2, 32], strides = [1, 1]} : vector<2x128xf32> to vector<2x32xf32>
    %215 = math.tanh %214 : vector<2x32xf32>
    %216 = vector.extract_strided_slice %201 {offsets = [0, 96], sizes = [2, 32], strides = [1, 1]} : vector<2x128xf32> to vector<2x32xf32>
    %217 = arith.negf %216 : vector<2x32xf32>
    %218 = math.exp %217 : vector<2x32xf32>
    %cst_56 = arith.constant 1.000000e+00 : f32
    %219 = vector.broadcast %cst_56 : f32 to vector<2x32xf32>
    %220 = arith.addf %219, %218 : vector<2x32xf32>
    %221 = arith.divf %219, %220 : vector<2x32xf32>
    %222 = arith.mulf %213, %164 : vector<2x32xf32>
    %223 = arith.mulf %207, %215 : vector<2x32xf32>
    %224 = arith.addf %222, %223 : vector<2x32xf32>
    %225 = math.tanh %224 : vector<2x32xf32>
    %226 = arith.mulf %221, %225 : vector<2x32xf32>
    %227 = arith.truncf %226 : vector<2x32xf32> to vector<2x32xbf16>
    %228 = arith.truncf %197 : vector<2x32xf32> to vector<2x32xbf16>
    %229 = tpu.concatenate %227, %228 in 1 : vector<2x32xbf16>, vector<2x32xbf16> -> vector<2x64xbf16>
    %cst_57 = arith.constant dense<0.000000e+00> : vector<2x128xf32>
    %230 = tpu.matmul %229, %8, %cst_57 {dimension_numbers = #tpu.dot_dimension_numbers<[1], [0], [0], [1], [0, 0, 1, 1], [], []>} : vector<2x64xbf16>, vector<64x128xbf16>, vector<2x128xf32> -> vector<2x128xf32>
    %231 = vector.broadcast %9 : vector<1x128xf32> to vector<2x128xf32>
    %232 = arith.addf %230, %231 : vector<2x128xf32>
    %233 = vector.extract_strided_slice %232 {offsets = [0, 0], sizes = [2, 32], strides = [1, 1]} : vector<2x128xf32> to vector<2x32xf32>
    %234 = arith.negf %233 : vector<2x32xf32>
    %235 = math.exp %234 : vector<2x32xf32>
    %cst_58 = arith.constant 1.000000e+00 : f32
    %236 = vector.broadcast %cst_58 : f32 to vector<2x32xf32>
    %237 = arith.addf %236, %235 : vector<2x32xf32>
    %238 = arith.divf %236, %237 : vector<2x32xf32>
    %239 = vector.extract_strided_slice %232 {offsets = [0, 32], sizes = [2, 32], strides = [1, 1]} : vector<2x128xf32> to vector<2x32xf32>
    %240 = arith.negf %239 : vector<2x32xf32>
    %241 = math.exp %240 : vector<2x32xf32>
    %cst_59 = arith.constant 1.000000e+00 : f32
    %242 = vector.broadcast %cst_59 : f32 to vector<2x32xf32>
    %243 = arith.addf %242, %241 : vector<2x32xf32>
    %244 = arith.divf %242, %243 : vector<2x32xf32>
    %245 = vector.extract_strided_slice %232 {offsets = [0, 64], sizes = [2, 32], strides = [1, 1]} : vector<2x128xf32> to vector<2x32xf32>
    %246 = math.tanh %245 : vector<2x32xf32>
    %247 = vector.extract_strided_slice %232 {offsets = [0, 96], sizes = [2, 32], strides = [1, 1]} : vector<2x128xf32> to vector<2x32xf32>
    %248 = arith.negf %247 : vector<2x32xf32>
    %249 = math.exp %248 : vector<2x32xf32>
    %cst_60 = arith.constant 1.000000e+00 : f32
    %250 = vector.broadcast %cst_60 : f32 to vector<2x32xf32>
    %251 = arith.addf %250, %249 : vector<2x32xf32>
    %252 = arith.divf %250, %251 : vector<2x32xf32>
    %253 = arith.mulf %244, %195 : vector<2x32xf32>
    %254 = arith.mulf %238, %246 : vector<2x32xf32>
    %255 = arith.addf %253, %254 : vector<2x32xf32>
    %256 = math.tanh %255 : vector<2x32xf32>
    %257 = arith.mulf %252, %256 : vector<2x32xf32>
    %c8 = arith.constant 8 : index
    %c0_61 = arith.constant 0 : index
    %258 = vector.load %arg13[%c8, %c0_61] : memref<16x128xf32, #tpu.memory_space<vmem>>, vector<2x128xf32>
    %259 = arith.truncf %226 : vector<2x32xf32> to vector<2x32xbf16>
    %cst_62 = arith.constant dense<0.000000e+00> : vector<2x128xf32>
    %260 = tpu.matmul %259, %7, %cst_62 {dimension_numbers = #tpu.dot_dimension_numbers<[1], [0], [0], [1], [0, 0, 1, 1], [], []>} : vector<2x32xbf16>, vector<32x128xbf16>, vector<2x128xf32> -> vector<2x128xf32>
    %261 = arith.addf %258, %260 : vector<2x128xf32>
    %262 = vector.extract_strided_slice %261 {offsets = [0, 0], sizes = [2, 32], strides = [1, 1]} : vector<2x128xf32> to vector<2x32xf32>
    %263 = arith.negf %262 : vector<2x32xf32>
    %264 = math.exp %263 : vector<2x32xf32>
    %cst_63 = arith.constant 1.000000e+00 : f32
    %265 = vector.broadcast %cst_63 : f32 to vector<2x32xf32>
    %266 = arith.addf %265, %264 : vector<2x32xf32>
    %267 = arith.divf %265, %266 : vector<2x32xf32>
    %268 = vector.extract_strided_slice %261 {offsets = [0, 32], sizes = [2, 32], strides = [1, 1]} : vector<2x128xf32> to vector<2x32xf32>
    %269 = arith.negf %268 : vector<2x32xf32>
    %270 = math.exp %269 : vector<2x32xf32>
    %cst_64 = arith.constant 1.000000e+00 : f32
    %271 = vector.broadcast %cst_64 : f32 to vector<2x32xf32>
    %272 = arith.addf %271, %270 : vector<2x32xf32>
    %273 = arith.divf %271, %272 : vector<2x32xf32>
    %274 = vector.extract_strided_slice %261 {offsets = [0, 64], sizes = [2, 32], strides = [1, 1]} : vector<2x128xf32> to vector<2x32xf32>
    %275 = math.tanh %274 : vector<2x32xf32>
    %276 = vector.extract_strided_slice %261 {offsets = [0, 96], sizes = [2, 32], strides = [1, 1]} : vector<2x128xf32> to vector<2x32xf32>
    %277 = arith.negf %276 : vector<2x32xf32>
    %278 = math.exp %277 : vector<2x32xf32>
    %cst_65 = arith.constant 1.000000e+00 : f32
    %279 = vector.broadcast %cst_65 : f32 to vector<2x32xf32>
    %280 = arith.addf %279, %278 : vector<2x32xf32>
    %281 = arith.divf %279, %280 : vector<2x32xf32>
    %282 = arith.mulf %273, %224 : vector<2x32xf32>
    %283 = arith.mulf %267, %275 : vector<2x32xf32>
    %284 = arith.addf %282, %283 : vector<2x32xf32>
    %285 = math.tanh %284 : vector<2x32xf32>
    %286 = arith.mulf %281, %285 : vector<2x32xf32>
    %287 = arith.truncf %286 : vector<2x32xf32> to vector<2x32xbf16>
    %288 = arith.truncf %257 : vector<2x32xf32> to vector<2x32xbf16>
    %289 = tpu.concatenate %287, %288 in 1 : vector<2x32xbf16>, vector<2x32xbf16> -> vector<2x64xbf16>
    %cst_66 = arith.constant dense<0.000000e+00> : vector<2x128xf32>
    %290 = tpu.matmul %289, %8, %cst_66 {dimension_numbers = #tpu.dot_dimension_numbers<[1], [0], [0], [1], [0, 0, 1, 1], [], []>} : vector<2x64xbf16>, vector<64x128xbf16>, vector<2x128xf32> -> vector<2x128xf32>
    %291 = vector.broadcast %9 : vector<1x128xf32> to vector<2x128xf32>
    %292 = arith.addf %290, %291 : vector<2x128xf32>
    %293 = vector.extract_strided_slice %292 {offsets = [0, 0], sizes = [2, 32], strides = [1, 1]} : vector<2x128xf32> to vector<2x32xf32>
    %294 = arith.negf %293 : vector<2x32xf32>
    %295 = math.exp %294 : vector<2x32xf32>
    %cst_67 = arith.constant 1.000000e+00 : f32
    %296 = vector.broadcast %cst_67 : f32 to vector<2x32xf32>
    %297 = arith.addf %296, %295 : vector<2x32xf32>
    %298 = arith.divf %296, %297 : vector<2x32xf32>
    %299 = vector.extract_strided_slice %292 {offsets = [0, 32], sizes = [2, 32], strides = [1, 1]} : vector<2x128xf32> to vector<2x32xf32>
    %300 = arith.negf %299 : vector<2x32xf32>
    %301 = math.exp %300 : vector<2x32xf32>
    %cst_68 = arith.constant 1.000000e+00 : f32
    %302 = vector.broadcast %cst_68 : f32 to vector<2x32xf32>
    %303 = arith.addf %302, %301 : vector<2x32xf32>
    %304 = arith.divf %302, %303 : vector<2x32xf32>
    %305 = vector.extract_strided_slice %292 {offsets = [0, 64], sizes = [2, 32], strides = [1, 1]} : vector<2x128xf32> to vector<2x32xf32>
    %306 = math.tanh %305 : vector<2x32xf32>
    %307 = vector.extract_strided_slice %292 {offsets = [0, 96], sizes = [2, 32], strides = [1, 1]} : vector<2x128xf32> to vector<2x32xf32>
    %308 = arith.negf %307 : vector<2x32xf32>
    %309 = math.exp %308 : vector<2x32xf32>
    %cst_69 = arith.constant 1.000000e+00 : f32
    %310 = vector.broadcast %cst_69 : f32 to vector<2x32xf32>
    %311 = arith.addf %310, %309 : vector<2x32xf32>
    %312 = arith.divf %310, %311 : vector<2x32xf32>
    %313 = arith.mulf %304, %255 : vector<2x32xf32>
    %314 = arith.mulf %298, %306 : vector<2x32xf32>
    %315 = arith.addf %313, %314 : vector<2x32xf32>
    %316 = math.tanh %315 : vector<2x32xf32>
    %317 = arith.mulf %312, %316 : vector<2x32xf32>
    %c10 = arith.constant 10 : index
    %c0_70 = arith.constant 0 : index
    %318 = vector.load %arg13[%c10, %c0_70] : memref<16x128xf32, #tpu.memory_space<vmem>>, vector<2x128xf32>
    %319 = arith.truncf %286 : vector<2x32xf32> to vector<2x32xbf16>
    %cst_71 = arith.constant dense<0.000000e+00> : vector<2x128xf32>
    %320 = tpu.matmul %319, %7, %cst_71 {dimension_numbers = #tpu.dot_dimension_numbers<[1], [0], [0], [1], [0, 0, 1, 1], [], []>} : vector<2x32xbf16>, vector<32x128xbf16>, vector<2x128xf32> -> vector<2x128xf32>
    %321 = arith.addf %318, %320 : vector<2x128xf32>
    %322 = vector.extract_strided_slice %321 {offsets = [0, 0], sizes = [2, 32], strides = [1, 1]} : vector<2x128xf32> to vector<2x32xf32>
    %323 = arith.negf %322 : vector<2x32xf32>
    %324 = math.exp %323 : vector<2x32xf32>
    %cst_72 = arith.constant 1.000000e+00 : f32
    %325 = vector.broadcast %cst_72 : f32 to vector<2x32xf32>
    %326 = arith.addf %325, %324 : vector<2x32xf32>
    %327 = arith.divf %325, %326 : vector<2x32xf32>
    %328 = vector.extract_strided_slice %321 {offsets = [0, 32], sizes = [2, 32], strides = [1, 1]} : vector<2x128xf32> to vector<2x32xf32>
    %329 = arith.negf %328 : vector<2x32xf32>
    %330 = math.exp %329 : vector<2x32xf32>
    %cst_73 = arith.constant 1.000000e+00 : f32
    %331 = vector.broadcast %cst_73 : f32 to vector<2x32xf32>
    %332 = arith.addf %331, %330 : vector<2x32xf32>
    %333 = arith.divf %331, %332 : vector<2x32xf32>
    %334 = vector.extract_strided_slice %321 {offsets = [0, 64], sizes = [2, 32], strides = [1, 1]} : vector<2x128xf32> to vector<2x32xf32>
    %335 = math.tanh %334 : vector<2x32xf32>
    %336 = vector.extract_strided_slice %321 {offsets = [0, 96], sizes = [2, 32], strides = [1, 1]} : vector<2x128xf32> to vector<2x32xf32>
    %337 = arith.negf %336 : vector<2x32xf32>
    %338 = math.exp %337 : vector<2x32xf32>
    %cst_74 = arith.constant 1.000000e+00 : f32
    %339 = vector.broadcast %cst_74 : f32 to vector<2x32xf32>
    %340 = arith.addf %339, %338 : vector<2x32xf32>
    %341 = arith.divf %339, %340 : vector<2x32xf32>
    %342 = arith.mulf %333, %284 : vector<2x32xf32>
    %343 = arith.mulf %327, %335 : vector<2x32xf32>
    %344 = arith.addf %342, %343 : vector<2x32xf32>
    %345 = math.tanh %344 : vector<2x32xf32>
    %346 = arith.mulf %341, %345 : vector<2x32xf32>
    %347 = arith.truncf %346 : vector<2x32xf32> to vector<2x32xbf16>
    %348 = arith.truncf %317 : vector<2x32xf32> to vector<2x32xbf16>
    %349 = tpu.concatenate %347, %348 in 1 : vector<2x32xbf16>, vector<2x32xbf16> -> vector<2x64xbf16>
    %cst_75 = arith.constant dense<0.000000e+00> : vector<2x128xf32>
    %350 = tpu.matmul %349, %8, %cst_75 {dimension_numbers = #tpu.dot_dimension_numbers<[1], [0], [0], [1], [0, 0, 1, 1], [], []>} : vector<2x64xbf16>, vector<64x128xbf16>, vector<2x128xf32> -> vector<2x128xf32>
    %351 = vector.broadcast %9 : vector<1x128xf32> to vector<2x128xf32>
    %352 = arith.addf %350, %351 : vector<2x128xf32>
    %353 = vector.extract_strided_slice %352 {offsets = [0, 0], sizes = [2, 32], strides = [1, 1]} : vector<2x128xf32> to vector<2x32xf32>
    %354 = arith.negf %353 : vector<2x32xf32>
    %355 = math.exp %354 : vector<2x32xf32>
    %cst_76 = arith.constant 1.000000e+00 : f32
    %356 = vector.broadcast %cst_76 : f32 to vector<2x32xf32>
    %357 = arith.addf %356, %355 : vector<2x32xf32>
    %358 = arith.divf %356, %357 : vector<2x32xf32>
    %359 = vector.extract_strided_slice %352 {offsets = [0, 32], sizes = [2, 32], strides = [1, 1]} : vector<2x128xf32> to vector<2x32xf32>
    %360 = arith.negf %359 : vector<2x32xf32>
    %361 = math.exp %360 : vector<2x32xf32>
    %cst_77 = arith.constant 1.000000e+00 : f32
    %362 = vector.broadcast %cst_77 : f32 to vector<2x32xf32>
    %363 = arith.addf %362, %361 : vector<2x32xf32>
    %364 = arith.divf %362, %363 : vector<2x32xf32>
    %365 = vector.extract_strided_slice %352 {offsets = [0, 64], sizes = [2, 32], strides = [1, 1]} : vector<2x128xf32> to vector<2x32xf32>
    %366 = math.tanh %365 : vector<2x32xf32>
    %367 = vector.extract_strided_slice %352 {offsets = [0, 96], sizes = [2, 32], strides = [1, 1]} : vector<2x128xf32> to vector<2x32xf32>
    %368 = arith.negf %367 : vector<2x32xf32>
    %369 = math.exp %368 : vector<2x32xf32>
    %cst_78 = arith.constant 1.000000e+00 : f32
    %370 = vector.broadcast %cst_78 : f32 to vector<2x32xf32>
    %371 = arith.addf %370, %369 : vector<2x32xf32>
    %372 = arith.divf %370, %371 : vector<2x32xf32>
    %373 = arith.mulf %364, %315 : vector<2x32xf32>
    %374 = arith.mulf %358, %366 : vector<2x32xf32>
    %375 = arith.addf %373, %374 : vector<2x32xf32>
    %376 = math.tanh %375 : vector<2x32xf32>
    %377 = arith.mulf %372, %376 : vector<2x32xf32>
    %c12 = arith.constant 12 : index
    %c0_79 = arith.constant 0 : index
    %378 = vector.load %arg13[%c12, %c0_79] : memref<16x128xf32, #tpu.memory_space<vmem>>, vector<2x128xf32>
    %379 = arith.truncf %346 : vector<2x32xf32> to vector<2x32xbf16>
    %cst_80 = arith.constant dense<0.000000e+00> : vector<2x128xf32>
    %380 = tpu.matmul %379, %7, %cst_80 {dimension_numbers = #tpu.dot_dimension_numbers<[1], [0], [0], [1], [0, 0, 1, 1], [], []>} : vector<2x32xbf16>, vector<32x128xbf16>, vector<2x128xf32> -> vector<2x128xf32>
    %381 = arith.addf %378, %380 : vector<2x128xf32>
    %382 = vector.extract_strided_slice %381 {offsets = [0, 0], sizes = [2, 32], strides = [1, 1]} : vector<2x128xf32> to vector<2x32xf32>
    %383 = arith.negf %382 : vector<2x32xf32>
    %384 = math.exp %383 : vector<2x32xf32>
    %cst_81 = arith.constant 1.000000e+00 : f32
    %385 = vector.broadcast %cst_81 : f32 to vector<2x32xf32>
    %386 = arith.addf %385, %384 : vector<2x32xf32>
    %387 = arith.divf %385, %386 : vector<2x32xf32>
    %388 = vector.extract_strided_slice %381 {offsets = [0, 32], sizes = [2, 32], strides = [1, 1]} : vector<2x128xf32> to vector<2x32xf32>
    %389 = arith.negf %388 : vector<2x32xf32>
    %390 = math.exp %389 : vector<2x32xf32>
    %cst_82 = arith.constant 1.000000e+00 : f32
    %391 = vector.broadcast %cst_82 : f32 to vector<2x32xf32>
    %392 = arith.addf %391, %390 : vector<2x32xf32>
    %393 = arith.divf %391, %392 : vector<2x32xf32>
    %394 = vector.extract_strided_slice %381 {offsets = [0, 64], sizes = [2, 32], strides = [1, 1]} : vector<2x128xf32> to vector<2x32xf32>
    %395 = math.tanh %394 : vector<2x32xf32>
    %396 = vector.extract_strided_slice %381 {offsets = [0, 96], sizes = [2, 32], strides = [1, 1]} : vector<2x128xf32> to vector<2x32xf32>
    %397 = arith.negf %396 : vector<2x32xf32>
    %398 = math.exp %397 : vector<2x32xf32>
    %cst_83 = arith.constant 1.000000e+00 : f32
    %399 = vector.broadcast %cst_83 : f32 to vector<2x32xf32>
    %400 = arith.addf %399, %398 : vector<2x32xf32>
    %401 = arith.divf %399, %400 : vector<2x32xf32>
    %402 = arith.mulf %393, %344 : vector<2x32xf32>
    %403 = arith.mulf %387, %395 : vector<2x32xf32>
    %404 = arith.addf %402, %403 : vector<2x32xf32>
    %405 = math.tanh %404 : vector<2x32xf32>
    %406 = arith.mulf %401, %405 : vector<2x32xf32>
    %407 = arith.truncf %406 : vector<2x32xf32> to vector<2x32xbf16>
    %408 = arith.truncf %377 : vector<2x32xf32> to vector<2x32xbf16>
    %409 = tpu.concatenate %407, %408 in 1 : vector<2x32xbf16>, vector<2x32xbf16> -> vector<2x64xbf16>
    %cst_84 = arith.constant dense<0.000000e+00> : vector<2x128xf32>
    %410 = tpu.matmul %409, %8, %cst_84 {dimension_numbers = #tpu.dot_dimension_numbers<[1], [0], [0], [1], [0, 0, 1, 1], [], []>} : vector<2x64xbf16>, vector<64x128xbf16>, vector<2x128xf32> -> vector<2x128xf32>
    %411 = vector.broadcast %9 : vector<1x128xf32> to vector<2x128xf32>
    %412 = arith.addf %410, %411 : vector<2x128xf32>
    %413 = vector.extract_strided_slice %412 {offsets = [0, 0], sizes = [2, 32], strides = [1, 1]} : vector<2x128xf32> to vector<2x32xf32>
    %414 = arith.negf %413 : vector<2x32xf32>
    %415 = math.exp %414 : vector<2x32xf32>
    %cst_85 = arith.constant 1.000000e+00 : f32
    %416 = vector.broadcast %cst_85 : f32 to vector<2x32xf32>
    %417 = arith.addf %416, %415 : vector<2x32xf32>
    %418 = arith.divf %416, %417 : vector<2x32xf32>
    %419 = vector.extract_strided_slice %412 {offsets = [0, 32], sizes = [2, 32], strides = [1, 1]} : vector<2x128xf32> to vector<2x32xf32>
    %420 = arith.negf %419 : vector<2x32xf32>
    %421 = math.exp %420 : vector<2x32xf32>
    %cst_86 = arith.constant 1.000000e+00 : f32
    %422 = vector.broadcast %cst_86 : f32 to vector<2x32xf32>
    %423 = arith.addf %422, %421 : vector<2x32xf32>
    %424 = arith.divf %422, %423 : vector<2x32xf32>
    %425 = vector.extract_strided_slice %412 {offsets = [0, 64], sizes = [2, 32], strides = [1, 1]} : vector<2x128xf32> to vector<2x32xf32>
    %426 = math.tanh %425 : vector<2x32xf32>
    %427 = vector.extract_strided_slice %412 {offsets = [0, 96], sizes = [2, 32], strides = [1, 1]} : vector<2x128xf32> to vector<2x32xf32>
    %428 = arith.negf %427 : vector<2x32xf32>
    %429 = math.exp %428 : vector<2x32xf32>
    %cst_87 = arith.constant 1.000000e+00 : f32
    %430 = vector.broadcast %cst_87 : f32 to vector<2x32xf32>
    %431 = arith.addf %430, %429 : vector<2x32xf32>
    %432 = arith.divf %430, %431 : vector<2x32xf32>
    %433 = arith.mulf %424, %375 : vector<2x32xf32>
    %434 = arith.mulf %418, %426 : vector<2x32xf32>
    %435 = arith.addf %433, %434 : vector<2x32xf32>
    %436 = math.tanh %435 : vector<2x32xf32>
    %437 = arith.mulf %432, %436 : vector<2x32xf32>
    %c14 = arith.constant 14 : index
    %c0_88 = arith.constant 0 : index
    %438 = vector.load %arg13[%c14, %c0_88] : memref<16x128xf32, #tpu.memory_space<vmem>>, vector<2x128xf32>
    %439 = arith.truncf %406 : vector<2x32xf32> to vector<2x32xbf16>
    %cst_89 = arith.constant dense<0.000000e+00> : vector<2x128xf32>
    %440 = tpu.matmul %439, %7, %cst_89 {dimension_numbers = #tpu.dot_dimension_numbers<[1], [0], [0], [1], [0, 0, 1, 1], [], []>} : vector<2x32xbf16>, vector<32x128xbf16>, vector<2x128xf32> -> vector<2x128xf32>
    %441 = arith.addf %438, %440 : vector<2x128xf32>
    %442 = vector.extract_strided_slice %441 {offsets = [0, 0], sizes = [2, 32], strides = [1, 1]} : vector<2x128xf32> to vector<2x32xf32>
    %443 = arith.negf %442 : vector<2x32xf32>
    %444 = math.exp %443 : vector<2x32xf32>
    %cst_90 = arith.constant 1.000000e+00 : f32
    %445 = vector.broadcast %cst_90 : f32 to vector<2x32xf32>
    %446 = arith.addf %445, %444 : vector<2x32xf32>
    %447 = arith.divf %445, %446 : vector<2x32xf32>
    %448 = vector.extract_strided_slice %441 {offsets = [0, 32], sizes = [2, 32], strides = [1, 1]} : vector<2x128xf32> to vector<2x32xf32>
    %449 = arith.negf %448 : vector<2x32xf32>
    %450 = math.exp %449 : vector<2x32xf32>
    %cst_91 = arith.constant 1.000000e+00 : f32
    %451 = vector.broadcast %cst_91 : f32 to vector<2x32xf32>
    %452 = arith.addf %451, %450 : vector<2x32xf32>
    %453 = arith.divf %451, %452 : vector<2x32xf32>
    %454 = vector.extract_strided_slice %441 {offsets = [0, 64], sizes = [2, 32], strides = [1, 1]} : vector<2x128xf32> to vector<2x32xf32>
    %455 = math.tanh %454 : vector<2x32xf32>
    %456 = vector.extract_strided_slice %441 {offsets = [0, 96], sizes = [2, 32], strides = [1, 1]} : vector<2x128xf32> to vector<2x32xf32>
    %457 = arith.negf %456 : vector<2x32xf32>
    %458 = math.exp %457 : vector<2x32xf32>
    %cst_92 = arith.constant 1.000000e+00 : f32
    %459 = vector.broadcast %cst_92 : f32 to vector<2x32xf32>
    %460 = arith.addf %459, %458 : vector<2x32xf32>
    %461 = arith.divf %459, %460 : vector<2x32xf32>
    %462 = arith.mulf %453, %404 : vector<2x32xf32>
    %463 = arith.mulf %447, %455 : vector<2x32xf32>
    %464 = arith.addf %462, %463 : vector<2x32xf32>
    %465 = math.tanh %464 : vector<2x32xf32>
    %466 = arith.mulf %461, %465 : vector<2x32xf32>
    %467 = arith.truncf %466 : vector<2x32xf32> to vector<2x32xbf16>
    %468 = arith.truncf %437 : vector<2x32xf32> to vector<2x32xbf16>
    %469 = tpu.concatenate %467, %468 in 1 : vector<2x32xbf16>, vector<2x32xbf16> -> vector<2x64xbf16>
    %cst_93 = arith.constant dense<0.000000e+00> : vector<2x128xf32>
    %470 = tpu.matmul %469, %8, %cst_93 {dimension_numbers = #tpu.dot_dimension_numbers<[1], [0], [0], [1], [0, 0, 1, 1], [], []>} : vector<2x64xbf16>, vector<64x128xbf16>, vector<2x128xf32> -> vector<2x128xf32>
    %471 = vector.broadcast %9 : vector<1x128xf32> to vector<2x128xf32>
    %472 = arith.addf %470, %471 : vector<2x128xf32>
    %473 = vector.extract_strided_slice %472 {offsets = [0, 0], sizes = [2, 32], strides = [1, 1]} : vector<2x128xf32> to vector<2x32xf32>
    %474 = arith.negf %473 : vector<2x32xf32>
    %475 = math.exp %474 : vector<2x32xf32>
    %cst_94 = arith.constant 1.000000e+00 : f32
    %476 = vector.broadcast %cst_94 : f32 to vector<2x32xf32>
    %477 = arith.addf %476, %475 : vector<2x32xf32>
    %478 = arith.divf %476, %477 : vector<2x32xf32>
    %479 = vector.extract_strided_slice %472 {offsets = [0, 32], sizes = [2, 32], strides = [1, 1]} : vector<2x128xf32> to vector<2x32xf32>
    %480 = arith.negf %479 : vector<2x32xf32>
    %481 = math.exp %480 : vector<2x32xf32>
    %cst_95 = arith.constant 1.000000e+00 : f32
    %482 = vector.broadcast %cst_95 : f32 to vector<2x32xf32>
    %483 = arith.addf %482, %481 : vector<2x32xf32>
    %484 = arith.divf %482, %483 : vector<2x32xf32>
    %485 = vector.extract_strided_slice %472 {offsets = [0, 64], sizes = [2, 32], strides = [1, 1]} : vector<2x128xf32> to vector<2x32xf32>
    %486 = math.tanh %485 : vector<2x32xf32>
    %487 = vector.extract_strided_slice %472 {offsets = [0, 96], sizes = [2, 32], strides = [1, 1]} : vector<2x128xf32> to vector<2x32xf32>
    %488 = arith.negf %487 : vector<2x32xf32>
    %489 = math.exp %488 : vector<2x32xf32>
    %cst_96 = arith.constant 1.000000e+00 : f32
    %490 = vector.broadcast %cst_96 : f32 to vector<2x32xf32>
    %491 = arith.addf %490, %489 : vector<2x32xf32>
    %492 = arith.divf %490, %491 : vector<2x32xf32>
    %493 = arith.mulf %484, %435 : vector<2x32xf32>
    %494 = arith.mulf %478, %486 : vector<2x32xf32>
    %495 = arith.addf %493, %494 : vector<2x32xf32>
    %496 = math.tanh %495 : vector<2x32xf32>
    %497 = arith.mulf %492, %496 : vector<2x32xf32>
    %cst_97 = arith.constant dense<0.000000e+00> : vector<2xf32>
    %498 = vector.multi_reduction <add>, %497, %cst_97 [1] : vector<2x32xf32> to vector<2xf32>
    %499 = vector.shape_cast %498 : vector<2xf32> to vector<2x1xf32>
    %cst_98 = arith.constant 3.200000e+01 : f32
    %500 = vector.broadcast %cst_98 : f32 to vector<2x1xf32>
    %501 = arith.divf %499, %500 : vector<2x1xf32>
    %502 = vector.broadcast %501 : vector<2x1xf32> to vector<2x32xf32>
    %503 = arith.subf %497, %502 : vector<2x32xf32>
    %504 = arith.mulf %503, %503 : vector<2x32xf32>
    %cst_99 = arith.constant dense<0.000000e+00> : vector<2xf32>
    %505 = vector.multi_reduction <add>, %504, %cst_99 [1] : vector<2x32xf32> to vector<2xf32>
    %506 = vector.shape_cast %505 : vector<2xf32> to vector<2x1xf32>
    %cst_100 = arith.constant 3.200000e+01 : f32
    %507 = vector.broadcast %cst_100 : f32 to vector<2x1xf32>
    %508 = arith.divf %506, %507 : vector<2x1xf32>
    %cst_101 = arith.constant 9.99999974E-6 : f32
    %509 = vector.broadcast %cst_101 : f32 to vector<2x1xf32>
    %510 = arith.addf %508, %509 : vector<2x1xf32>
    %511 = math.rsqrt %510 : vector<2x1xf32>
    %512 = vector.broadcast %511 : vector<2x1xf32> to vector<2x32xf32>
    %513 = arith.mulf %503, %512 : vector<2x32xf32>
    %c0_102 = arith.constant 0 : index
    %c0_103 = arith.constant 0 : index
    %514 = vector.load %arg8[%c0_102, %c0_103] : memref<1x32xf32, #tpu.memory_space<vmem>>, vector<1x32xf32>
    %515 = vector.broadcast %514 : vector<1x32xf32> to vector<2x32xf32>
    %516 = arith.mulf %513, %515 : vector<2x32xf32>
    %c0_104 = arith.constant 0 : index
    %c0_105 = arith.constant 0 : index
    %517 = vector.load %arg9[%c0_104, %c0_105] : memref<1x32xf32, #tpu.memory_space<vmem>>, vector<1x32xf32>
    %518 = vector.broadcast %517 : vector<1x32xf32> to vector<2x32xf32>
    %519 = arith.addf %516, %518 : vector<2x32xf32>
    %520 = math.tanh %519 : vector<2x32xf32>
    %c0_106 = arith.constant 0 : index
    %c0_107 = arith.constant 0 : index
    %521 = vector.load %arg10[%c0_106, %c0_107] : memref<32x2xf32, #tpu.memory_space<vmem>>, vector<32x2xf32>
    %cst_108 = arith.constant dense<0.000000e+00> : vector<2x2xf32>
    %522 = tpu.matmul %520, %521, %cst_108 {dimension_numbers = #tpu.dot_dimension_numbers<[1], [0], [0], [1], [0, 0, 1, 1], [], []>} : vector<2x32xf32>, vector<32x2xf32>, vector<2x2xf32> -> vector<2x2xf32>
    %c0_109 = arith.constant 0 : index
    %c0_110 = arith.constant 0 : index
    %523 = vector.load %arg11[%c0_109, %c0_110] : memref<1x2xf32, #tpu.memory_space<vmem>>, vector<1x2xf32>
    %524 = vector.broadcast %523 : vector<1x2xf32> to vector<2x2xf32>
    %525 = arith.addf %522, %524 : vector<2x2xf32>
    %c0_111 = arith.constant 0 : index
    %c0_112 = arith.constant 0 : index
    %526 = vector.load %arg12[%c0_111, %c0_112] : memref<2x2xf32, #tpu.memory_space<vmem>>, vector<2x2xf32>
    tpu.vector_store %arg12[%c0_111, %c0_112], %525 {strides = array<i32>} : memref<2x2xf32, #tpu.memory_space<vmem>>, vector<2x2xf32>,
    return
  }
}

</mosaic_0001>

<llo_original>
// kernel: mylstm_forward.1
$region0: #{mylstm_forward.1}
  #allocation0 [shape = 'u32[]', space=smem, size = 0x4, offset = 0x4, fixed_abs, tag = 'smem constant byte address 0x4 - core index']
  #allocation1 [shape = 'u32[144,128]{1,0:T(1,128)}', space=vmem, size = 0x12000, scoped, tag = 'internal scratch']
  #allocation2 [shape = 'f32[16,128]{1,0:T(8,128)}', space=vmem, size = 0x2000, scoped, tag = 'scratch operand']
  %s0 = inlined_call_operand.vmem [shape: bf16[16,16], index: 0, kind: input, shape index: {}]
  %s1 = inlined_call_operand.vmem [shape: f32[2,2,32], index: 1, kind: input, shape index: {}]
  %s2 = inlined_call_operand.vmem [shape: f32[2,2,32], index: 2, kind: input, shape index: {}]
  %s3 = inlined_call_operand.vmem [shape: bf16[16,128], index: 3, kind: input, shape index: {}]
  %s4 = inlined_call_operand.vmem [shape: bf16[32,128], index: 4, kind: input, shape index: {}]
  %s5 = inlined_call_operand.vmem [shape: f32[1,128], index: 5, kind: input, shape index: {}]
  %s6 = inlined_call_operand.vmem [shape: bf16[64,128], index: 6, kind: input, shape index: {}]
  %s7 = inlined_call_operand.vmem [shape: f32[1,128], index: 7, kind: input, shape index: {}]
  %s8 = inlined_call_operand.vmem [shape: f32[1,32], index: 8, kind: input, shape index: {}]
  %s9 = inlined_call_operand.vmem [shape: f32[1,32], index: 9, kind: input, shape index: {}]
  %s10 = inlined_call_operand.vmem [shape: f32[32,2], index: 10, kind: input, shape index: {}]
  %s11 = inlined_call_operand.vmem [shape: f32[1,2], index: 11, kind: input, shape index: {}]
  %s12 = inlined_call_operand.hbm [shape: f32[2,2], index: 12, kind: output, shape index: {}]
  %s13 = sld [smem:[#allocation0]]
  $region58: #{mylstm_forward.1} parent=0
    _
  %s15 = ssub.s32 1, %s13
  %s16 = scalar_select 0, %s15, %s13
  $region1: #{mylstm_forward.1} parent=0
    #allocation3 [shape = 'u8[1024]{0}', space=vmem, size = 0x400, scoped, tag = 'output window, operand 0, single buffered']
    #allocation4 [shape = 's32[1]{0}', space=sflag, size = 0x4, scoped, tag = 'scoped memory for mylstm_forward.1']
    %17 = vsyncpa [#allocation4], 0
    // Predicated region
    $region2: #{mylstm_forward.1} parent=1 // pred_check
      _
    $region3: #{mylstm_forward.1} parent=1 // pred_check_branch
      %19 = sbr.rel (0) target = $region5
    $region4: #{mylstm_forward.1} parent=1 // pred_region
      _
    $region5: #{mylstm_forward.1} parent=1 // pred_fallthru
      _
    // Predicated region
    $region6: #{mylstm_forward.1} parent=1 // pred_check
      _
    $region7: #{mylstm_forward.1} parent=1 // pred_check_branch
      %21 = sbr.rel (0) target = $region9
    $region8: #{mylstm_forward.1} parent=1 // pred_region
      _
    $region9: #{mylstm_forward.1} parent=1 // pred_fallthru
      _
    // Predicated region
    $region10: #{mylstm_forward.1} parent=1 // pred_check
      _
    $region11: #{mylstm_forward.1} parent=1 // pred_check_branch
      %23 = sbr.rel (0) target = $region13
    $region12: #{mylstm_forward.1} parent=1 // pred_region
      _
    $region13: #{mylstm_forward.1} parent=1 // pred_fallthru
      _
    // Predicated region
    $region14: #{mylstm_forward.1} parent=1 // pred_check
      _
    $region15: #{mylstm_forward.1} parent=1 // pred_check_branch
      %25 = sbr.rel (0) target = $region17
    $region16: #{mylstm_forward.1} parent=1 // pred_region
      _
    $region17: #{mylstm_forward.1} parent=1 // pred_fallthru
      _
    // Predicated region
    $region18: #{mylstm_forward.1} parent=1 // pred_check
      _
    $region19: #{mylstm_forward.1} parent=1 // pred_check_branch
      %27 = sbr.rel (0) target = $region21
    $region20: #{mylstm_forward.1} parent=1 // pred_region
      _
    $region21: #{mylstm_forward.1} parent=1 // pred_fallthru
      _
    // Predicated region
    $region22: #{mylstm_forward.1} parent=1 // pred_check
      _
    $region23: #{mylstm_forward.1} parent=1 // pred_check_branch
      %29 = sbr.rel (0) target = $region25
    $region24: #{mylstm_forward.1} parent=1 // pred_region
      _
    $region25: #{mylstm_forward.1} parent=1 // pred_fallthru
      _
    // Predicated region
    $region26: #{mylstm_forward.1} parent=1 // pred_check
      _
    $region27: #{mylstm_forward.1} parent=1 // pred_check_branch
      %31 = sbr.rel (0) target = $region29
    $region28: #{mylstm_forward.1} parent=1 // pred_region
      _
    $region29: #{mylstm_forward.1} parent=1 // pred_fallthru
      _
    // Predicated region
    $region30: #{mylstm_forward.1} parent=1 // pred_check
      _
    $region31: #{mylstm_forward.1} parent=1 // pred_check_branch
      %33 = sbr.rel (0) target = $region33
    $region32: #{mylstm_forward.1} parent=1 // pred_region
      _
    $region33: #{mylstm_forward.1} parent=1 // pred_fallthru
      _
    // Predicated region
    $region34: #{mylstm_forward.1} parent=1 // pred_check
      _
    $region35: #{mylstm_forward.1} parent=1 // pred_check_branch
      %35 = sbr.rel (0) target = $region37
    $region36: #{mylstm_forward.1} parent=1 // pred_region
      _
    $region37: #{mylstm_forward.1} parent=1 // pred_fallthru
      _
    // Predicated region
    $region38: #{mylstm_forward.1} parent=1 // pred_check
      _
    $region39: #{mylstm_forward.1} parent=1 // pred_check_branch
      %37 = sbr.rel (0) target = $region41
    $region40: #{mylstm_forward.1} parent=1 // pred_region
      _
    $region41: #{mylstm_forward.1} parent=1 // pred_fallthru
      _
    // Predicated region
    $region42: #{mylstm_forward.1} parent=1 // pred_check
      _
    $region43: #{mylstm_forward.1} parent=1 // pred_check_branch
      %39 = sbr.rel (0) target = $region45
    $region44: #{mylstm_forward.1} parent=1 // pred_region
      _
    $region45: #{mylstm_forward.1} parent=1 // pred_fallthru
      _
    // Predicated region
    $region46: #{mylstm_forward.1} parent=1 // pred_check
      _
    $region47: #{mylstm_forward.1} parent=1 // pred_check_branch
      %41 = sbr.rel (0) target = $region49
    $region48: #{mylstm_forward.1} parent=1 // pred_region
      _
    $region49: #{mylstm_forward.1} parent=1 // pred_fallthru
      _
    %v43 = vld [vmem:[%s0] sm:$0xf]
    %v44 = vld [vmem:[%s0 + $0x4] sm:$0xf]
    %v45 = vld [vmem:[%s3] sm:$0xf]
    %v46 = vld [vmem:[%s3 + $0x4] sm:$0xf]
    %v47 = vld [vmem:[%s5] sm:$0x1]
    %v49 = vlaneseq
    %v50 = vshrl.u32 %v49, 7
    %v51 = vsub.s32 0, %v50
    %v52 = vrot.slane %v47, %v51
    %v56 = vunpack.c.l.b16 %v43
    %v57 = vunpack.c.l.b16 %v44
    %v58 = vpack.c.b16 %v57, %v56
    %v61 = vunpack.c.l.b16 %v45
    %v62 = vunpack.c.l.b16 %v46
    %v63 = vpack.c.b16 %v62, %v61
    %vm65 = vcmask 130048
    %v67 = vsel %vm65, %v58, 0
    %69 = vmatprep.subr.bf16.mxu0 0
    %70 = vmatpush1.bf16.msra.mxu0 %v63
    %71 = vmatprep.subr.bf16.mxu0 0
    %72 = vmatpush1.bf16.msra.mxu0 0
    %73 = vmatprep.subr.bf16.mxu0 0
    %74 = vmatpush1.bf16.msra.mxu0 0
    %75 = vmatprep.subr.bf16.mxu0 0
    %76 = vmatpush1.bf16.msra.mxu0 0
    %77 = vmatprep.subr.bf16.mxu0 0
    %78 = vmatpush1.bf16.msra.mxu0 0
    %79 = vmatprep.subr.bf16.mxu0 0
    %80 = vmatpush1.bf16.msra.mxu0 0
    %81 = vmatprep.subr.bf16.mxu0 0
    %82 = vmatpush1.bf16.msra.mxu0 0
    %83 = vmatprep.subr.bf16.mxu0 0
    %84 = vmatpush1.bf16.msra.mxu0 0
    %85 = vmatprep.subr.bf16.mxu0 0
    %86 = vmatpush1.bf16.msra.mxu0 0
    %87 = vmatprep.subr.bf16.mxu0 0
    %88 = vmatpush1.bf16.msra.mxu0 0
    %89 = vmatprep.subr.bf16.mxu0 0
    %90 = vmatpush1.bf16.msra.mxu0 0
    %91 = vmatprep.subr.bf16.mxu0 0
    %92 = vmatpush1.bf16.msra.mxu0 0
    %93 = vmatprep.subr.bf16.mxu0 0
    %94 = vmatpush1.bf16.msra.mxu0 0
    %95 = vmatprep.subr.bf16.mxu0 0
    %96 = vmatpush1.bf16.msra.mxu0 0
    %97 = vmatprep.subr.bf16.mxu0 0
    %98 = vmatpush1.bf16.msra.mxu0 0
    %99 = vmatprep.subr.bf16.mxu0 0
    %100 = vmatpush1.bf16.msra.mxu0 0
    %101 = vmatprep.mubr.bf16.mxu0 0
    %102 = vmatmul.mubr.bf16.gmra.mrb[0].mxu0 %v67
    %v103 = vpop.f32.mrb[0].mxu0
    %v104 = vadd.f32 %v52, %v103
    %v105 = vpop.f32.mrb[0].mxu0
    %v106 = vpop.f32.mrb[0].mxu0
    %v107 = vadd.f32 %v52, %v106
    %v108 = vpop.f32.mrb[0].mxu0
    %109 = vdwg.mxu0
    %110 = vst [vmem:[#allocation2] sm:$0xff] %v104
    %111 = vst [vmem:[#allocation2 + $0x8] sm:$0xff] %v107
    %v112 = vld [vmem:[%s4] sm:$0xf]
    %v113 = vld [vmem:[%s4 + $0x4] sm:$0xf]
    %v114 = vld [vmem:[%s4 + $0x8] sm:$0xf]
    %v115 = vld [vmem:[%s4 + $0xc] sm:$0xf]
    %v116 = vld [vmem:[%s6] sm:$0xf]
    %v117 = vld [vmem:[%s6 + $0x4] sm:$0xf]
    %v118 = vld [vmem:[%s6 + $0x8] sm:$0xf]
    %v119 = vld [vmem:[%s6 + $0xc] sm:$0xf]
    %v120 = vld [vmem:[%s6 + $0x10] sm:$0xf]
    %v121 = vld [vmem:[%s6 + $0x14] sm:$0xf]
    %v122 = vld [vmem:[%s6 + $0x18] sm:$0xf]
    %v123 = vld [vmem:[%s6 + $0x1c] sm:$0xf]
    %v124 = vld [vmem:[%s7] sm:$0x1]
    %v125 = vld [vmem:[%s1] sm:$0x3]
    %s126 = scalar_lea.vmem %s1, 2
    %v127 = vld [vmem:[%s126] sm:$0x3]
    %v128 = vld [vmem:[%s2] sm:$0x3]
    %s129 = scalar_lea.vmem %s2, 2
    %v130 = vld [vmem:[%s129] sm:$0x3]
    %v131 = vld [vmem:[#allocation2] sm:$0x3]
    %v132 = vpack.c.bf16 %v125, %v125
    %v137 = vunpack.c.l.b16 %v112
    %v138 = vunpack.c.l.b16 %v113
    %v139 = vunpack.c.l.b16 %v114
    %v140 = vunpack.c.l.b16 %v115
    %v141 = vpack.c.b16 %v138, %v137
    %v142 = vpack.c.b16 %v140, %v139
    %vm145 = vcmask 261120
    %v147 = vsel %vm145, %v132, 0
    %149 = vmatprep.subr.bf16.mxu0 0
    %150 = vmatpush1.bf16.msra.mxu0 %v141
    %151 = vmatprep.subr.bf16.mxu0 0
    %152 = vmatpush1.bf16.msra.mxu0 %v142
    %153 = vmatprep.subr.bf16.mxu0 0
    %154 = vmatpush1.bf16.msra.mxu0 0
    %155 = vmatprep.subr.bf16.mxu0 0
    %156 = vmatpush1.bf16.msra.mxu0 0
    %157 = vmatprep.subr.bf16.mxu0 0
    %158 = vmatpush1.bf16.msra.mxu0 0
    %159 = vmatprep.subr.bf16.mxu0 0
    %160 = vmatpush1.bf16.msra.mxu0 0
    %161 = vmatprep.subr.bf16.mxu0 0
    %162 = vmatpush1.bf16.msra.mxu0 0
    %163 = vmatprep.subr.bf16.mxu0 0
    %164 = vmatpush1.bf16.msra.mxu0 0
    %165 = vmatprep.subr.bf16.mxu0 0
    %166 = vmatpush1.bf16.msra.mxu0 0
    %167 = vmatprep.subr.bf16.mxu0 0
    %168 = vmatpush1.bf16.msra.mxu0 0
    %169 = vmatprep.subr.bf16.mxu0 0
    %170 = vmatpush1.bf16.msra.mxu0 0
    %171 = vmatprep.subr.bf16.mxu0 0
    %172 = vmatpush1.bf16.msra.mxu0 0
    %173 = vmatprep.subr.bf16.mxu0 0
    %174 = vmatpush1.bf16.msra.mxu0 0
    %175 = vmatprep.subr.bf16.mxu0 0
    %176 = vmatpush1.bf16.msra.mxu0 0
    %177 = vmatprep.subr.bf16.mxu0 0
    %178 = vmatpush1.bf16.msra.mxu0 0
    %179 = vmatprep.subr.bf16.mxu0 0
    %180 = vmatpush1.bf16.msra.mxu0 0
    %181 = vmatprep.mubr.bf16.mxu0 0
    %182 = vmatmul.mubr.bf16.gmra.mrb[0].mxu0 %v147
    %v183 = vpop.f32.mrb[0].mxu0
    %v184 = vadd.f32 0.0, %v183
    %v185 = vpop.f32.mrb[0].mxu0
    %v186 = vpop.f32.mrb[0].mxu0
    %v187 = vpop.f32.mrb[0].mxu0
    %188 = vdwg.mxu0
    %v189 = vadd.f32 %v131, %v184
    %v190 = vxor.u32 %v189, 2147483648
    %v191 = vmul.f32 %v190, 1.442695
    %v192 = vpow.pop %v191
    %v193 = vadd.f32 %v192, 1.0
    %v194 = vrcp.pop %v193
    %v195 = vmul.f32 1.0, %v194
    %v196 = vtanh.pop %v189
    %198 = vrot.lane.b32.xlu0 %v128, 32
    %v199 = vpop.permute.xlu0 %198
    %v201 = vmul.f32 %v195, %v199
    %203 = vrot.lane.b32.xlu0 %v196, 64
    %v204 = vpop.permute.xlu0 %203
    %v206 = vmul.f32 %v195, %v204
    %208 = vrot.lane.b32.xlu0 %v206, 32
    %v209 = vpop.permute.xlu0 %208
    %v211 = vadd.f32 %v201, %v209
    %v212 = vtanh.pop %v211
    %214 = vrot.lane.b32.xlu0 %v212, 64
    %v215 = vpop.permute.xlu0 %214
    %v217 = vmul.f32 %v195, %v215
    %v218 = vpack.c.bf16 %v217, %v217
    %v219 = vpack.c.bf16 %v127, %v127
    %221 = vrot.lane.b32.xlu0 %v218, 32
    %v222 = vpop.permute.xlu0 %221
    %224 = vrot.lane.b32.xlu0 %v219, 32
    %v225 = vpop.permute.xlu0 %224
    %v228 = vsel %vm145, %v222, %v225
    %v230 = vlaneseq
    %v231 = vshrl.u32 %v230, 7
    %v232 = vsub.s32 0, %v231
    %v233 = vrot.slane %v124, %v232
    %v243 = vunpack.c.l.b16 %v116
    %v244 = vunpack.c.l.b16 %v117
    %v245 = vunpack.c.l.b16 %v118
    %v246 = vunpack.c.l.b16 %v119
    %v247 = vunpack.c.l.b16 %v120
    %v248 = vunpack.c.l.b16 %v121
    %v249 = vunpack.c.l.b16 %v122
    %v250 = vunpack.c.l.b16 %v123
    %v251 = vpack.c.b16 %v244, %v243
    %v252 = vpack.c.b16 %v246, %v245
    %v253 = vpack.c.b16 %v248, %v247
    %v254 = vpack.c.b16 %v250, %v249
    %vm259 = vcmask 523264
    %v260 = vsel %vm259, %v228, 0
    %262 = vmatprep.subr.bf16.mxu0 0
    %263 = vmatpush1.bf16.msra.mxu0 %v251
    %264 = vmatprep.subr.bf16.mxu0 0
    %265 = vmatpush1.bf16.msra.mxu0 %v252
    %266 = vmatprep.subr.bf16.mxu0 0
    %267 = vmatpush1.bf16.msra.mxu0 %v253
    %268 = vmatprep.subr.bf16.mxu0 0
    %269 = vmatpush1.bf16.msra.mxu0 %v254
    %270 = vmatprep.subr.bf16.mxu0 0
    %271 = vmatpush1.bf16.msra.mxu0 0
    %272 = vmatprep.subr.bf16.mxu0 0
    %273 = vmatpush1.bf16.msra.mxu0 0
    %274 = vmatprep.subr.bf16.mxu0 0
    %275 = vmatpush1.bf16.msra.mxu0 0
    %276 = vmatprep.subr.bf16.mxu0 0
    %277 = vmatpush1.bf16.msra.mxu0 0
    %278 = vmatprep.subr.bf16.mxu0 0
    %279 = vmatpush1.bf16.msra.mxu0 0
    %280 = vmatprep.subr.bf16.mxu0 0
    %281 = vmatpush1.bf16.msra.mxu0 0
    %282 = vmatprep.subr.bf16.mxu0 0
    %283 = vmatpush1.bf16.msra.mxu0 0
    %284 = vmatprep.subr.bf16.mxu0 0
    %285 = vmatpush1.bf16.msra.mxu0 0
    %286 = vmatprep.subr.bf16.mxu0 0
    %287 = vmatpush1.bf16.msra.mxu0 0
    %288 = vmatprep.subr.bf16.mxu0 0
    %289 = vmatpush1.bf16.msra.mxu0 0
    %290 = vmatprep.subr.bf16.mxu0 0
    %291 = vmatpush1.bf16.msra.mxu0 0
    %292 = vmatprep.subr.bf16.mxu0 0
    %293 = vmatpush1.bf16.msra.mxu0 0
    %294 = vmatprep.mubr.bf16.mxu0 0
    %295 = vmatmul.mubr.bf16.gmra.mrb[0].mxu0 %v260
    %v296 = vpop.f32.mrb[0].mxu0
    %v297 = vadd.f32 %v233, %v296
    %v298 = vpop.f32.mrb[0].mxu0
    %v299 = vpop.f32.mrb[0].mxu0
    %v300 = vpop.f32.mrb[0].mxu0
    %301 = vdwg.mxu0
    %v302 = vxor.u32 %v297, 2147483648
    %v303 = vmul.f32 %v302, 1.442695
    %v304 = vpow.pop %v303
    %v305 = vadd.f32 %v304, 1.0
    %v306 = vrcp.pop %v305
    %v307 = vmul.f32 1.0, %v306
    %v308 = vtanh.pop %v297
    %310 = vrot.lane.b32.xlu0 %v130, 32
    %v311 = vpop.permute.xlu0 %310
    %v313 = vmul.f32 %v307, %v311
    %315 = vrot.lane.b32.xlu0 %v308, 64
    %v316 = vpop.permute.xlu0 %315
    %v318 = vmul.f32 %v307, %v316
    %320 = vrot.lane.b32.xlu0 %v318, 32
    %v321 = vpop.permute.xlu0 %320
    %v323 = vadd.f32 %v313, %v321
    %v324 = vtanh.pop %v323
    %326 = vrot.lane.b32.xlu0 %v324, 64
    %v327 = vpop.permute.xlu0 %326
    %v329 = vmul.f32 %v307, %v327
    %v330 = vld [vmem:[#allocation2 + $0x2] sm:$0x3]
    %v331 = vsel %vm145, %v222, 0
    %333 = vmatprep.subr.bf16.mxu0 0
    %334 = vmatpush1.bf16.msra.mxu0 %v141
    %335 = vmatprep.subr.bf16.mxu0 0
    %336 = vmatpush1.bf16.msra.mxu0 %v142
    %337 = vmatprep.subr.bf16.mxu0 0
    %338 = vmatpush1.bf16.msra.mxu0 0
    %339 = vmatprep.subr.bf16.mxu0 0
    %340 = vmatpush1.bf16.msra.mxu0 0
    %341 = vmatprep.subr.bf16.mxu0 0
    %342 = vmatpush1.bf16.msra.mxu0 0
    %343 = vmatprep.subr.bf16.mxu0 0
    %344 = vmatpush1.bf16.msra.mxu0 0
    %345 = vmatprep.subr.bf16.mxu0 0
    %346 = vmatpush1.bf16.msra.mxu0 0
    %347 = vmatprep.subr.bf16.mxu0 0
    %348 = vmatpush1.bf16.msra.mxu0 0
    %349 = vmatprep.subr.bf16.mxu0 0
    %350 = vmatpush1.bf16.msra.mxu0 0
    %351 = vmatprep.subr.bf16.mxu0 0
    %352 = vmatpush1.bf16.msra.mxu0 0
    %353 = vmatprep.subr.bf16.mxu0 0
    %354 = vmatpush1.bf16.msra.mxu0 0
    %355 = vmatprep.subr.bf16.mxu0 0
    %356 = vmatpush1.bf16.msra.mxu0 0
    %357 = vmatprep.subr.bf16.mxu0 0
    %358 = vmatpush1.bf16.msra.mxu0 0
    %359 = vmatprep.subr.bf16.mxu0 0
    %360 = vmatpush1.bf16.msra.mxu0 0
    %361 = vmatprep.subr.bf16.mxu0 0
    %362 = vmatpush1.bf16.msra.mxu0 0
    %363 = vmatprep.subr.bf16.mxu0 0
    %364 = vmatpush1.bf16.msra.mxu0 0
    %365 = vmatprep.mubr.bf16.mxu0 0
    %366 = vmatmul.mubr.bf16.gmra.mrb[0].mxu0 %v331
    %v367 = vpop.f32.mrb[0].mxu0
    %v368 = vadd.f32 0.0, %v367
    %v369 = vpop.f32.mrb[0].mxu0
    %v370 = vpop.f32.mrb[0].mxu0
    %v371 = vpop.f32.mrb[0].mxu0
    %372 = vdwg.mxu0
    %v373 = vadd.f32 %v330, %v368
    %v374 = vxor.u32 %v373, 2147483648
    %v375 = vmul.f32 %v374, 1.442695
    %v376 = vpow.pop %v375
    %v377 = vadd.f32 %v376, 1.0
    %v378 = vrcp.pop %v377
    %v379 = vmul.f32 1.0, %v378
    %v380 = vtanh.pop %v373
    %v381 = vmul.f32 %v379, %v211
    %383 = vrot.lane.b32.xlu0 %v380, 64
    %v384 = vpop.permute.xlu0 %383
    %v386 = vmul.f32 %v379, %v384
    %388 = vrot.lane.b32.xlu0 %v386, 32
    %v389 = vpop.permute.xlu0 %388
    %v391 = vadd.f32 %v381, %v389
    %v392 = vtanh.pop %v391
    %394 = vrot.lane.b32.xlu0 %v392, 64
    %v395 = vpop.permute.xlu0 %394
    %v397 = vmul.f32 %v379, %v395
    %v398 = vpack.c.bf16 %v397, %v397
    %v399 = vpack.c.bf16 %v329, %v329
    %401 = vrot.lane.b32.xlu0 %v398, 32
    %v402 = vpop.permute.xlu0 %401
    %404 = vrot.lane.b32.xlu0 %v399, 64
    %v405 = vpop.permute.xlu0 %404
    %v408 = vsel %vm145, %v402, %v405
    %v409 = vsel %vm259, %v408, 0
    %411 = vmatprep.subr.bf16.mxu0 0
    %412 = vmatpush1.bf16.msra.mxu0 %v251
    %413 = vmatprep.subr.bf16.mxu0 0
    %414 = vmatpush1.bf16.msra.mxu0 %v252
    %415 = vmatprep.subr.bf16.mxu0 0
    %416 = vmatpush1.bf16.msra.mxu0 %v253
    %417 = vmatprep.subr.bf16.mxu0 0
    %418 = vmatpush1.bf16.msra.mxu0 %v254
    %419 = vmatprep.subr.bf16.mxu0 0
    %420 = vmatpush1.bf16.msra.mxu0 0
    %421 = vmatprep.subr.bf16.mxu0 0
    %422 = vmatpush1.bf16.msra.mxu0 0
    %423 = vmatprep.subr.bf16.mxu0 0
    %424 = vmatpush1.bf16.msra.mxu0 0
    %425 = vmatprep.subr.bf16.mxu0 0
    %426 = vmatpush1.bf16.msra.mxu0 0
    %427 = vmatprep.subr.bf16.mxu0 0
    %428 = vmatpush1.bf16.msra.mxu0 0
    %429 = vmatprep.subr.bf16.mxu0 0
    %430 = vmatpush1.bf16.msra.mxu0 0
    %431 = vmatprep.subr.bf16.mxu0 0
    %432 = vmatpush1.bf16.msra.mxu0 0
    %433 = vmatprep.subr.bf16.mxu0 0
    %434 = vmatpush1.bf16.msra.mxu0 0
    %435 = vmatprep.subr.bf16.mxu0 0
    %436 = vmatpush1.bf16.msra.mxu0 0
    %437 = vmatprep.subr.bf16.mxu0 0
    %438 = vmatpush1.bf16.msra.mxu0 0
    %439 = vmatprep.subr.bf16.mxu0 0
    %440 = vmatpush1.bf16.msra.mxu0 0
    %441 = vmatprep.subr.bf16.mxu0 0
    %442 = vmatpush1.bf16.msra.mxu0 0
    %443 = vmatprep.mubr.bf16.mxu0 0
    %444 = vmatmul.mubr.bf16.gmra.mrb[0].mxu0 %v409
    %v445 = vpop.f32.mrb[0].mxu0
    %v446 = vadd.f32 %v233, %v445
    %v447 = vpop.f32.mrb[0].mxu0
    %v448 = vpop.f32.mrb[0].mxu0
    %v449 = vpop.f32.mrb[0].mxu0
    %450 = vdwg.mxu0
    %v451 = vxor.u32 %v446, 2147483648
    %v452 = vmul.f32 %v451, 1.442695
    %v453 = vpow.pop %v452
    %v454 = vadd.f32 %v453, 1.0
    %v455 = vrcp.pop %v454
    %v456 = vmul.f32 1.0, %v455
    %v457 = vtanh.pop %v446
    %v458 = vmul.f32 %v456, %v323
    %460 = vrot.lane.b32.xlu0 %v457, 64
    %v461 = vpop.permute.xlu0 %460
    %v463 = vmul.f32 %v456, %v461
    %465 = vrot.lane.b32.xlu0 %v463, 32
    %v466 = vpop.permute.xlu0 %465
    %v468 = vadd.f32 %v458, %v466
    %v469 = vtanh.pop %v468
    %471 = vrot.lane.b32.xlu0 %v469, 64
    %v472 = vpop.permute.xlu0 %471
    %v474 = vmul.f32 %v456, %v472
    %v475 = vld [vmem:[#allocation2 + $0x4] sm:$0x3]
    %v476 = vsel %vm145, %v402, 0
    %478 = vmatprep.subr.bf16.mxu0 0
    %479 = vmatpush1.bf16.msra.mxu0 %v141
    %480 = vmatprep.subr.bf16.mxu0 0
    %481 = vmatpush1.bf16.msra.mxu0 %v142
    %482 = vmatprep.subr.bf16.mxu0 0
    %483 = vmatpush1.bf16.msra.mxu0 0
    %484 = vmatprep.subr.bf16.mxu0 0
    %485 = vmatpush1.bf16.msra.mxu0 0
    %486 = vmatprep.subr.bf16.mxu0 0
    %487 = vmatpush1.bf16.msra.mxu0 0
    %488 = vmatprep.subr.bf16.mxu0 0
    %489 = vmatpush1.bf16.msra.mxu0 0
    %490 = vmatprep.subr.bf16.mxu0 0
    %491 = vmatpush1.bf16.msra.mxu0 0
    %492 = vmatprep.subr.bf16.mxu0 0
    %493 = vmatpush1.bf16.msra.mxu0 0
    %494 = vmatprep.subr.bf16.mxu0 0
    %495 = vmatpush1.bf16.msra.mxu0 0
    %496 = vmatprep.subr.bf16.mxu0 0
    %497 = vmatpush1.bf16.msra.mxu0 0
    %498 = vmatprep.subr.bf16.mxu0 0
    %499 = vmatpush1.bf16.msra.mxu0 0
    %500 = vmatprep.subr.bf16.mxu0 0
    %501 = vmatpush1.bf16.msra.mxu0 0
    %502 = vmatprep.subr.bf16.mxu0 0
    %503 = vmatpush1.bf16.msra.mxu0 0
    %504 = vmatprep.subr.bf16.mxu0 0
    %505 = vmatpush1.bf16.msra.mxu0 0
    %506 = vmatprep.subr.bf16.mxu0 0
    %507 = vmatpush1.bf16.msra.mxu0 0
    %508 = vmatprep.subr.bf16.mxu0 0
    %509 = vmatpush1.bf16.msra.mxu0 0
    %510 = vmatprep.mubr.bf16.mxu0 0
    %511 = vmatmul.mubr.bf16.gmra.mrb[0].mxu0 %v476
    %v512 = vpop.f32.mrb[0].mxu0
    %v513 = vadd.f32 0.0, %v512
    %v514 = vpop.f32.mrb[0].mxu0
    %v515 = vpop.f32.mrb[0].mxu0
    %v516 = vpop.f32.mrb[0].mxu0
    %517 = vdwg.mxu0
    %v518 = vadd.f32 %v475, %v513
    %v519 = vxor.u32 %v518, 2147483648
    %v520 = vmul.f32 %v519, 1.442695
    %v521 = vpow.pop %v520
    %v522 = vadd.f32 %v521, 1.0
    %v523 = vrcp.pop %v522
    %v524 = vmul.f32 1.0, %v523
    %v525 = vtanh.pop %v518
    %v526 = vmul.f32 %v524, %v391
    %528 = vrot.lane.b32.xlu0 %v525, 64
    %v529 = vpop.permute.xlu0 %528
    %v531 = vmul.f32 %v524, %v529
    %533 = vrot.lane.b32.xlu0 %v531, 32
    %v534 = vpop.permute.xlu0 %533
    %v536 = vadd.f32 %v526, %v534
    %v537 = vtanh.pop %v536
    %539 = vrot.lane.b32.xlu0 %v537, 64
    %v540 = vpop.permute.xlu0 %539
    %v542 = vmul.f32 %v524, %v540
    %v543 = vpack.c.bf16 %v542, %v542
    %v544 = vpack.c.bf16 %v474, %v474
    %546 = vrot.lane.b32.xlu0 %v543, 32
    %v547 = vpop.permute.xlu0 %546
    %549 = vrot.lane.b32.xlu0 %v544, 64
    %v550 = vpop.permute.xlu0 %549
    %v553 = vsel %vm145, %v547, %v550
    %v554 = vsel %vm259, %v553, 0
    %556 = vmatprep.subr.bf16.mxu0 0
    %557 = vmatpush1.bf16.msra.mxu0 %v251
    %558 = vmatprep.subr.bf16.mxu0 0
    %559 = vmatpush1.bf16.msra.mxu0 %v252
    %560 = vmatprep.subr.bf16.mxu0 0
    %561 = vmatpush1.bf16.msra.mxu0 %v253
    %562 = vmatprep.subr.bf16.mxu0 0
    %563 = vmatpush1.bf16.msra.mxu0 %v254
    %564 = vmatprep.subr.bf16.mxu0 0
    %565 = vmatpush1.bf16.msra.mxu0 0
    %566 = vmatprep.subr.bf16.mxu0 0
    %567 = vmatpush1.bf16.msra.mxu0 0
    %568 = vmatprep.subr.bf16.mxu0 0
    %569 = vmatpush1.bf16.msra.mxu0 0
    %570 = vmatprep.subr.bf16.mxu0 0
    %571 = vmatpush1.bf16.msra.mxu0 0
    %572 = vmatprep.subr.bf16.mxu0 0
    %573 = vmatpush1.bf16.msra.mxu0 0
    %574 = vmatprep.subr.bf16.mxu0 0
    %575 = vmatpush1.bf16.msra.mxu0 0
    %576 = vmatprep.subr.bf16.mxu0 0
    %577 = vmatpush1.bf16.msra.mxu0 0
    %578 = vmatprep.subr.bf16.mxu0 0
    %579 = vmatpush1.bf16.msra.mxu0 0
    %580 = vmatprep.subr.bf16.mxu0 0
    %581 = vmatpush1.bf16.msra.mxu0 0
    %582 = vmatprep.subr.bf16.mxu0 0
    %583 = vmatpush1.bf16.msra.mxu0 0
    %584 = vmatprep.subr.bf16.mxu0 0
    %585 = vmatpush1.bf16.msra.mxu0 0
    %586 = vmatprep.subr.bf16.mxu0 0
    %587 = vmatpush1.bf16.msra.mxu0 0
    %588 = vmatprep.mubr.bf16.mxu0 0
    %589 = vmatmul.mubr.bf16.gmra.mrb[0].mxu0 %v554
    %v590 = vpop.f32.mrb[0].mxu0
    %v591 = vadd.f32 %v233, %v590
    %v592 = vpop.f32.mrb[0].mxu0
    %v593 = vpop.f32.mrb[0].mxu0
    %v594 = vpop.f32.mrb[0].mxu0
    %595 = vdwg.mxu0
    %v596 = vxor.u32 %v591, 2147483648
    %v597 = vmul.f32 %v596, 1.442695
    %v598 = vpow.pop %v597
    %v599 = vadd.f32 %v598, 1.0
    %v600 = vrcp.pop %v599
    %v601 = vmul.f32 1.0, %v600
    %v602 = vtanh.pop %v591
    %v603 = vmul.f32 %v601, %v468
    %605 = vrot.lane.b32.xlu0 %v602, 64
    %v606 = vpop.permute.xlu0 %605
    %v608 = vmul.f32 %v601, %v606
    %610 = vrot.lane.b32.xlu0 %v608, 32
    %v611 = vpop.permute.xlu0 %610
    %v613 = vadd.f32 %v603, %v611
    %v614 = vtanh.pop %v613
    %616 = vrot.lane.b32.xlu0 %v614, 64
    %v617 = vpop.permute.xlu0 %616
    %v619 = vmul.f32 %v601, %v617
    %v620 = vld [vmem:[#allocation2 + $0x6] sm:$0x3]
    %v621 = vsel %vm145, %v547, 0
    %623 = vmatprep.subr.bf16.mxu0 0
    %624 = vmatpush1.bf16.msra.mxu0 %v141
    %625 = vmatprep.subr.bf16.mxu0 0
    %626 = vmatpush1.bf16.msra.mxu0 %v142
    %627 = vmatprep.subr.bf16.mxu0 0
    %628 = vmatpush1.bf16.msra.mxu0 0
    %629 = vmatprep.subr.bf16.mxu0 0
    %630 = vmatpush1.bf16.msra.mxu0 0
    %631 = vmatprep.subr.bf16.mxu0 0
    %632 = vmatpush1.bf16.msra.mxu0 0
    %633 = vmatprep.subr.bf16.mxu0 0
    %634 = vmatpush1.bf16.msra.mxu0 0
    %635 = vmatprep.subr.bf16.mxu0 0
    %636 = vmatpush1.bf16.msra.mxu0 0
    %637 = vmatprep.subr.bf16.mxu0 0
    %638 = vmatpush1.bf16.msra.mxu0 0
    %639 = vmatprep.subr.bf16.mxu0 0
    %640 = vmatpush1.bf16.msra.mxu0 0
    %641 = vmatprep.subr.bf16.mxu0 0
    %642 = vmatpush1.bf16.msra.mxu0 0
    %643 = vmatprep.subr.bf16.mxu0 0
    %644 = vmatpush1.bf16.msra.mxu0 0
    %645 = vmatprep.subr.bf16.mxu0 0
    %646 = vmatpush1.bf16.msra.mxu0 0
    %647 = vmatprep.subr.bf16.mxu0 0
    %648 = vmatpush1.bf16.msra.mxu0 0
    %649 = vmatprep.subr.bf16.mxu0 0
    %650 = vmatpush1.bf16.msra.mxu0 0
    %651 = vmatprep.subr.bf16.mxu0 0
    %652 = vmatpush1.bf16.msra.mxu0 0
    %653 = vmatprep.subr.bf16.mxu0 0
    %654 = vmatpush1.bf16.msra.mxu0 0
    %655 = vmatprep.mubr.bf16.mxu0 0
    %656 = vmatmul.mubr.bf16.gmra.mrb[0].mxu0 %v621
    %v657 = vpop.f32.mrb[0].mxu0
    %v658 = vadd.f32 0.0, %v657
    %v659 = vpop.f32.mrb[0].mxu0
    %v660 = vpop.f32.mrb[0].mxu0
    %v661 = vpop.f32.mrb[0].mxu0
    %662 = vdwg.mxu0
    %v663 = vadd.f32 %v620, %v658
    %v664 = vxor.u32 %v663, 2147483648
    %v665 = vmul.f32 %v664, 1.442695
    %v666 = vpow.pop %v665
    %v667 = vadd.f32 %v666, 1.0
    %v668 = vrcp.pop %v667
    %v669 = vmul.f32 1.0, %v668
    %v670 = vtanh.pop %v663
    %v671 = vmul.f32 %v669, %v536
    %673 = vrot.lane.b32.xlu0 %v670, 64
    %v674 = vpop.permute.xlu0 %673
    %v676 = vmul.f32 %v669, %v674
    %678 = vrot.lane.b32.xlu0 %v676, 32
    %v679 = vpop.permute.xlu0 %678
    %v681 = vadd.f32 %v671, %v679
    %v682 = vtanh.pop %v681
    %684 = vrot.lane.b32.xlu0 %v682, 64
    %v685 = vpop.permute.xlu0 %684
    %v687 = vmul.f32 %v669, %v685
    %v688 = vpack.c.bf16 %v687, %v687
    %v689 = vpack.c.bf16 %v619, %v619
    %691 = vrot.lane.b32.xlu0 %v688, 32
    %v692 = vpop.permute.xlu0 %691
    %694 = vrot.lane.b32.xlu0 %v689, 64
    %v695 = vpop.permute.xlu0 %694
    %v698 = vsel %vm145, %v692, %v695
    %v699 = vsel %vm259, %v698, 0
    %701 = vmatprep.subr.bf16.mxu0 0
    %702 = vmatpush1.bf16.msra.mxu0 %v251
    %703 = vmatprep.subr.bf16.mxu0 0
    %704 = vmatpush1.bf16.msra.mxu0 %v252
    %705 = vmatprep.subr.bf16.mxu0 0
    %706 = vmatpush1.bf16.msra.mxu0 %v253
    %707 = vmatprep.subr.bf16.mxu0 0
    %708 = vmatpush1.bf16.msra.mxu0 %v254
    %709 = vmatprep.subr.bf16.mxu0 0
    %710 = vmatpush1.bf16.msra.mxu0 0
    %711 = vmatprep.subr.bf16.mxu0 0
    %712 = vmatpush1.bf16.msra.mxu0 0
    %713 = vmatprep.subr.bf16.mxu0 0
    %714 = vmatpush1.bf16.msra.mxu0 0
    %715 = vmatprep.subr.bf16.mxu0 0
    %716 = vmatpush1.bf16.msra.mxu0 0
    %717 = vmatprep.subr.bf16.mxu0 0
    %718 = vmatpush1.bf16.msra.mxu0 0
    %719 = vmatprep.subr.bf16.mxu0 0
    %720 = vmatpush1.bf16.msra.mxu0 0
    %721 = vmatprep.subr.bf16.mxu0 0
    %722 = vmatpush1.bf16.msra.mxu0 0
    %723 = vmatprep.subr.bf16.mxu0 0
    %724 = vmatpush1.bf16.msra.mxu0 0
    %725 = vmatprep.subr.bf16.mxu0 0
    %726 = vmatpush1.bf16.msra.mxu0 0
    %727 = vmatprep.subr.bf16.mxu0 0
    %728 = vmatpush1.bf16.msra.mxu0 0
    %729 = vmatprep.subr.bf16.mxu0 0
    %730 = vmatpush1.bf16.msra.mxu0 0
    %731 = vmatprep.subr.bf16.mxu0 0
    %732 = vmatpush1.bf16.msra.mxu0 0
    %733 = vmatprep.mubr.bf16.mxu0 0
    %734 = vmatmul.mubr.bf16.gmra.mrb[0].mxu0 %v699
    %v735 = vpop.f32.mrb[0].mxu0
    %v736 = vadd.f32 %v233, %v735
    %v737 = vpop.f32.mrb[0].mxu0
    %v738 = vpop.f32.mrb[0].mxu0
    %v739 = vpop.f32.mrb[0].mxu0
    %740 = vdwg.mxu0
    %v741 = vxor.u32 %v736, 2147483648
    %v742 = vmul.f32 %v741, 1.442695
    %v743 = vpow.pop %v742
    %v744 = vadd.f32 %v743, 1.0
    %v745 = vrcp.pop %v744
    %v746 = vmul.f32 1.0, %v745
    %v747 = vtanh.pop %v736
    %v748 = vmul.f32 %v746, %v613
    %750 = vrot.lane.b32.xlu0 %v747, 64
    %v751 = vpop.permute.xlu0 %750
    %v753 = vmul.f32 %v746, %v751
    %755 = vrot.lane.b32.xlu0 %v753, 32
    %v756 = vpop.permute.xlu0 %755
    %v758 = vadd.f32 %v748, %v756
    %v759 = vtanh.pop %v758
    %761 = vrot.lane.b32.xlu0 %v759, 64
    %v762 = vpop.permute.xlu0 %761
    %v764 = vmul.f32 %v746, %v762
    %v765 = vld [vmem:[#allocation2 + $0x8] sm:$0x3]
    %v766 = vsel %vm145, %v692, 0
    %768 = vmatprep.subr.bf16.mxu0 0
    %769 = vmatpush1.bf16.msra.mxu0 %v141
    %770 = vmatprep.subr.bf16.mxu0 0
    %771 = vmatpush1.bf16.msra.mxu0 %v142
    %772 = vmatprep.subr.bf16.mxu0 0
    %773 = vmatpush1.bf16.msra.mxu0 0
    %774 = vmatprep.subr.bf16.mxu0 0
    %775 = vmatpush1.bf16.msra.mxu0 0
    %776 = vmatprep.subr.bf16.mxu0 0
    %777 = vmatpush1.bf16.msra.mxu0 0
    %778 = vmatprep.subr.bf16.mxu0 0
    %779 = vmatpush1.bf16.msra.mxu0 0
    %780 = vmatprep.subr.bf16.mxu0 0
    %781 = vmatpush1.bf16.msra.mxu0 0
    %782 = vmatprep.subr.bf16.mxu0 0
    %783 = vmatpush1.bf16.msra.mxu0 0
    %784 = vmatprep.subr.bf16.mxu0 0
    %785 = vmatpush1.bf16.msra.mxu0 0
    %786 = vmatprep.subr.bf16.mxu0 0
    %787 = vmatpush1.bf16.msra.mxu0 0
    %788 = vmatprep.subr.bf16.mxu0 0
    %789 = vmatpush1.bf16.msra.mxu0 0
    %790 = vmatprep.subr.bf16.mxu0 0
    %791 = vmatpush1.bf16.msra.mxu0 0
    %792 = vmatprep.subr.bf16.mxu0 0
    %793 = vmatpush1.bf16.msra.mxu0 0
    %794 = vmatprep.subr.bf16.mxu0 0
    %795 = vmatpush1.bf16.msra.mxu0 0
    %796 = vmatprep.subr.bf16.mxu0 0
    %797 = vmatpush1.bf16.msra.mxu0 0
    %798 = vmatprep.subr.bf16.mxu0 0
    %799 = vmatpush1.bf16.msra.mxu0 0
    %800 = vmatprep.mubr.bf16.mxu0 0
    %801 = vmatmul.mubr.bf16.gmra.mrb[0].mxu0 %v766
    %v802 = vpop.f32.mrb[0].mxu0
    %v803 = vadd.f32 0.0, %v802
    %v804 = vpop.f32.mrb[0].mxu0
    %v805 = vpop.f32.mrb[0].mxu0
    %v806 = vpop.f32.mrb[0].mxu0
    %807 = vdwg.mxu0
    %v808 = vadd.f32 %v765, %v803
    %v809 = vxor.u32 %v808, 2147483648
    %v810 = vmul.f32 %v809, 1.442695
    %v811 = vpow.pop %v810
    %v812 = vadd.f32 %v811, 1.0
    %v813 = vrcp.pop %v812
    %v814 = vmul.f32 1.0, %v813
    %v815 = vtanh.pop %v808
    %v816 = vmul.f32 %v814, %v681
    %818 = vrot.lane.b32.xlu0 %v815, 64
    %v819 = vpop.permute.xlu0 %818
    %v821 = vmul.f32 %v814, %v819
    %823 = vrot.lane.b32.xlu0 %v821, 32
    %v824 = vpop.permute.xlu0 %823
    %v826 = vadd.f32 %v816, %v824
    %v827 = vtanh.pop %v826
    %829 = vrot.lane.b32.xlu0 %v827, 64
    %v830 = vpop.permute.xlu0 %829
    %v832 = vmul.f32 %v814, %v830
    %v833 = vpack.c.bf16 %v832, %v832
    %v834 = vpack.c.bf16 %v764, %v764
    %836 = vrot.lane.b32.xlu0 %v833, 32
    %v837 = vpop.permute.xlu0 %836
    %839 = vrot.lane.b32.xlu0 %v834, 64
    %v840 = vpop.permute.xlu0 %839
    %v843 = vsel %vm145, %v837, %v840
    %v844 = vsel %vm259, %v843, 0
    %846 = vmatprep.subr.bf16.mxu0 0
    %847 = vmatpush1.bf16.msra.mxu0 %v251
    %848 = vmatprep.subr.bf16.mxu0 0
    %849 = vmatpush1.bf16.msra.mxu0 %v252
    %850 = vmatprep.subr.bf16.mxu0 0
    %851 = vmatpush1.bf16.msra.mxu0 %v253
    %852 = vmatprep.subr.bf16.mxu0 0
    %853 = vmatpush1.bf16.msra.mxu0 %v254
    %854 = vmatprep.subr.bf16.mxu0 0
    %855 = vmatpush1.bf16.msra.mxu0 0
    %856 = vmatprep.subr.bf16.mxu0 0
    %857 = vmatpush1.bf16.msra.mxu0 0
    %858 = vmatprep.subr.bf16.mxu0 0
    %859 = vmatpush1.bf16.msra.mxu0 0
    %860 = vmatprep.subr.bf16.mxu0 0
    %861 = vmatpush1.bf16.msra.mxu0 0
    %862 = vmatprep.subr.bf16.mxu0 0
    %863 = vmatpush1.bf16.msra.mxu0 0
    %864 = vmatprep.subr.bf16.mxu0 0
    %865 = vmatpush1.bf16.msra.mxu0 0
    %866 = vmatprep.subr.bf16.mxu0 0
    %867 = vmatpush1.bf16.msra.mxu0 0
    %868 = vmatprep.subr.bf16.mxu0 0
    %869 = vmatpush1.bf16.msra.mxu0 0
    %870 = vmatprep.subr.bf16.mxu0 0
    %871 = vmatpush1.bf16.msra.mxu0 0
    %872 = vmatprep.subr.bf16.mxu0 0
    %873 = vmatpush1.bf16.msra.mxu0 0
    %874 = vmatprep.subr.bf16.mxu0 0
    %875 = vmatpush1.bf16.msra.mxu0 0
    %876 = vmatprep.subr.bf16.mxu0 0
    %877 = vmatpush1.bf16.msra.mxu0 0
    %878 = vmatprep.mubr.bf16.mxu0 0
    %879 = vmatmul.mubr.bf16.gmra.mrb[0].mxu0 %v844
    %v880 = vpop.f32.mrb[0].mxu0
    %v881 = vadd.f32 %v233, %v880
    %v882 = vpop.f32.mrb[0].mxu0
    %v883 = vpop.f32.mrb[0].mxu0
    %v884 = vpop.f32.mrb[0].mxu0
    %885 = vdwg.mxu0
    %v886 = vxor.u32 %v881, 2147483648
    %v887 = vmul.f32 %v886, 1.442695
    %v888 = vpow.pop %v887
    %v889 = vadd.f32 %v888, 1.0
    %v890 = vrcp.pop %v889
    %v891 = vmul.f32 1.0, %v890
    %v892 = vtanh.pop %v881
    %v893 = vmul.f32 %v891, %v758
    %895 = vrot.lane.b32.xlu0 %v892, 64
    %v896 = vpop.permute.xlu0 %895
    %v898 = vmul.f32 %v891, %v896
    %900 = vrot.lane.b32.xlu0 %v898, 32
    %v901 = vpop.permute.xlu0 %900
    %v903 = vadd.f32 %v893, %v901
    %v904 = vtanh.pop %v903
    %906 = vrot.lane.b32.xlu0 %v904, 64
    %v907 = vpop.permute.xlu0 %906
    %v909 = vmul.f32 %v891, %v907
    %v910 = vld [vmem:[#allocation2 + $0xa] sm:$0x3]
    %v911 = vsel %vm145, %v837, 0
    %913 = vmatprep.subr.bf16.mxu0 0
    %914 = vmatpush1.bf16.msra.mxu0 %v141
    %915 = vmatprep.subr.bf16.mxu0 0
    %916 = vmatpush1.bf16.msra.mxu0 %v142
    %917 = vmatprep.subr.bf16.mxu0 0
    %918 = vmatpush1.bf16.msra.mxu0 0
    %919 = vmatprep.subr.bf16.mxu0 0
    %920 = vmatpush1.bf16.msra.mxu0 0
    %921 = vmatprep.subr.bf16.mxu0 0
    %922 = vmatpush1.bf16.msra.mxu0 0
    %923 = vmatprep.subr.bf16.mxu0 0
    %924 = vmatpush1.bf16.msra.mxu0 0
    %925 = vmatprep.subr.bf16.mxu0 0
    %926 = vmatpush1.bf16.msra.mxu0 0
    %927 = vmatprep.subr.bf16.mxu0 0
    %928 = vmatpush1.bf16.msra.mxu0 0
    %929 = vmatprep.subr.bf16.mxu0 0
    %930 = vmatpush1.bf16.msra.mxu0 0
    %931 = vmatprep.subr.bf16.mxu0 0
    %932 = vmatpush1.bf16.msra.mxu0 0
    %933 = vmatprep.subr.bf16.mxu0 0
    %934 = vmatpush1.bf16.msra.mxu0 0
    %935 = vmatprep.subr.bf16.mxu0 0
    %936 = vmatpush1.bf16.msra.mxu0 0
    %937 = vmatprep.subr.bf16.mxu0 0
    %938 = vmatpush1.bf16.msra.mxu0 0
    %939 = vmatprep.subr.bf16.mxu0 0
    %940 = vmatpush1.bf16.msra.mxu0 0
    %941 = vmatprep.subr.bf16.mxu0 0
    %942 = vmatpush1.bf16.msra.mxu0 0
    %943 = vmatprep.subr.bf16.mxu0 0
    %944 = vmatpush1.bf16.msra.mxu0 0
    %945 = vmatprep.mubr.bf16.mxu0 0
    %946 = vmatmul.mubr.bf16.gmra.mrb[0].mxu0 %v911
    %v947 = vpop.f32.mrb[0].mxu0
    %v948 = vadd.f32 0.0, %v947
    %v949 = vpop.f32.mrb[0].mxu0
    %v950 = vpop.f32.mrb[0].mxu0
    %v951 = vpop.f32.mrb[0].mxu0
    %952 = vdwg.mxu0
    %v953 = vadd.f32 %v910, %v948
    %v954 = vxor.u32 %v953, 2147483648
    %v955 = vmul.f32 %v954, 1.442695
    %v956 = vpow.pop %v955
    %v957 = vadd.f32 %v956, 1.0
    %v958 = vrcp.pop %v957
    %v959 = vmul.f32 1.0, %v958
    %v960 = vtanh.pop %v953
    %v961 = vmul.f32 %v959, %v826
    %963 = vrot.lane.b32.xlu0 %v960, 64
    %v964 = vpop.permute.xlu0 %963
    %v966 = vmul.f32 %v959, %v964
    %968 = vrot.lane.b32.xlu0 %v966, 32
    %v969 = vpop.permute.xlu0 %968
    %v971 = vadd.f32 %v961, %v969
    %v972 = vtanh.pop %v971
    %974 = vrot.lane.b32.xlu0 %v972, 64
    %v975 = vpop.permute.xlu0 %974
    %v977 = vmul.f32 %v959, %v975
    %v978 = vpack.c.bf16 %v977, %v977
    %v979 = vpack.c.bf16 %v909, %v909
    %981 = vrot.lane.b32.xlu0 %v978, 32
    %v982 = vpop.permute.xlu0 %981
    %984 = vrot.lane.b32.xlu0 %v979, 64
    %v985 = vpop.permute.xlu0 %984
    %v988 = vsel %vm145, %v982, %v985
    %v989 = vsel %vm259, %v988, 0
    %991 = vmatprep.subr.bf16.mxu0 0
    %992 = vmatpush1.bf16.msra.mxu0 %v251
    %993 = vmatprep.subr.bf16.mxu0 0
    %994 = vmatpush1.bf16.msra.mxu0 %v252
    %995 = vmatprep.subr.bf16.mxu0 0
    %996 = vmatpush1.bf16.msra.mxu0 %v253
    %997 = vmatprep.subr.bf16.mxu0 0
    %998 = vmatpush1.bf16.msra.mxu0 %v254
    %999 = vmatprep.subr.bf16.mxu0 0
    %1000 = vmatpush1.bf16.msra.mxu0 0
    %1001 = vmatprep.subr.bf16.mxu0 0
    %1002 = vmatpush1.bf16.msra.mxu0 0
    %1003 = vmatprep.subr.bf16.mxu0 0
    %1004 = vmatpush1.bf16.msra.mxu0 0
    %1005 = vmatprep.subr.bf16.mxu0 0
    %1006 = vmatpush1.bf16.msra.mxu0 0
    %1007 = vmatprep.subr.bf16.mxu0 0
    %1008 = vmatpush1.bf16.msra.mxu0 0
    %1009 = vmatprep.subr.bf16.mxu0 0
    %1010 = vmatpush1.bf16.msra.mxu0 0
    %1011 = vmatprep.subr.bf16.mxu0 0
    %1012 = vmatpush1.bf16.msra.mxu0 0
    %1013 = vmatprep.subr.bf16.mxu0 0
    %1014 = vmatpush1.bf16.msra.mxu0 0
    %1015 = vmatprep.subr.bf16.mxu0 0
    %1016 = vmatpush1.bf16.msra.mxu0 0
    %1017 = vmatprep.subr.bf16.mxu0 0
    %1018 = vmatpush1.bf16.msra.mxu0 0
    %1019 = vmatprep.subr.bf16.mxu0 0
    %1020 = vmatpush1.bf16.msra.mxu0 0
    %1021 = vmatprep.subr.bf16.mxu0 0
    %1022 = vmatpush1.bf16.msra.mxu0 0
    %1023 = vmatprep.mubr.bf16.mxu0 0
    %1024 = vmatmul.mubr.bf16.gmra.mrb[0].mxu0 %v989
    %v1025 = vpop.f32.mrb[0].mxu0
    %v1026 = vadd.f32 %v233, %v1025
    %v1027 = vpop.f32.mrb[0].mxu0
    %v1028 = vpop.f32.mrb[0].mxu0
    %v1029 = vpop.f32.mrb[0].mxu0
    %1030 = vdwg.mxu0
    %v1031 = vxor.u32 %v1026, 2147483648
    %v1032 = vmul.f32 %v1031, 1.442695
    %v1033 = vpow.pop %v1032
    %v1034 = vadd.f32 %v1033, 1.0
    %v1035 = vrcp.pop %v1034
    %v1036 = vmul.f32 1.0, %v1035
    %v1037 = vtanh.pop %v1026
    %v1038 = vmul.f32 %v1036, %v903
    %1040 = vrot.lane.b32.xlu0 %v1037, 64
    %v1041 = vpop.permute.xlu0 %1040
    %v1043 = vmul.f32 %v1036, %v1041
    %1045 = vrot.lane.b32.xlu0 %v1043, 32
    %v1046 = vpop.permute.xlu0 %1045
    %v1048 = vadd.f32 %v1038, %v1046
    %v1049 = vtanh.pop %v1048
    %1051 = vrot.lane.b32.xlu0 %v1049, 64
    %v1052 = vpop.permute.xlu0 %1051
    %v1054 = vmul.f32 %v1036, %v1052
    %v1055 = vld [vmem:[#allocation2 + $0xc] sm:$0x3]
    %v1056 = vsel %vm145, %v982, 0
    %1058 = vmatprep.subr.bf16.mxu0 0
    %1059 = vmatpush1.bf16.msra.mxu0 %v141
    %1060 = vmatprep.subr.bf16.mxu0 0
    %1061 = vmatpush1.bf16.msra.mxu0 %v142
    %1062 = vmatprep.subr.bf16.mxu0 0
    %1063 = vmatpush1.bf16.msra.mxu0 0
    %1064 = vmatprep.subr.bf16.mxu0 0
    %1065 = vmatpush1.bf16.msra.mxu0 0
    %1066 = vmatprep.subr.bf16.mxu0 0
    %1067 = vmatpush1.bf16.msra.mxu0 0
    %1068 = vmatprep.subr.bf16.mxu0 0
    %1069 = vmatpush1.bf16.msra.mxu0 0
    %1070 = vmatprep.subr.bf16.mxu0 0
    %1071 = vmatpush1.bf16.msra.mxu0 0
    %1072 = vmatprep.subr.bf16.mxu0 0
    %1073 = vmatpush1.bf16.msra.mxu0 0
    %1074 = vmatprep.subr.bf16.mxu0 0
    %1075 = vmatpush1.bf16.msra.mxu0 0
    %1076 = vmatprep.subr.bf16.mxu0 0
    %1077 = vmatpush1.bf16.msra.mxu0 0
    %1078 = vmatprep.subr.bf16.mxu0 0
    %1079 = vmatpush1.bf16.msra.mxu0 0
    %1080 = vmatprep.subr.bf16.mxu0 0
    %1081 = vmatpush1.bf16.msra.mxu0 0
    %1082 = vmatprep.subr.bf16.mxu0 0
    %1083 = vmatpush1.bf16.msra.mxu0 0
    %1084 = vmatprep.subr.bf16.mxu0 0
    %1085 = vmatpush1.bf16.msra.mxu0 0
    %1086 = vmatprep.subr.bf16.mxu0 0
    %1087 = vmatpush1.bf16.msra.mxu0 0
    %1088 = vmatprep.subr.bf16.mxu0 0
    %1089 = vmatpush1.bf16.msra.mxu0 0
    %1090 = vmatprep.mubr.bf16.mxu0 0
    %1091 = vmatmul.mubr.bf16.gmra.mrb[0].mxu0 %v1056
    %v1092 = vpop.f32.mrb[0].mxu0
    %v1093 = vadd.f32 0.0, %v1092
    %v1094 = vpop.f32.mrb[0].mxu0
    %v1095 = vpop.f32.mrb[0].mxu0
    %v1096 = vpop.f32.mrb[0].mxu0
    %1097 = vdwg.mxu0
    %v1098 = vadd.f32 %v1055, %v1093
    %v1099 = vxor.u32 %v1098, 2147483648
    %v1100 = vmul.f32 %v1099, 1.442695
    %v1101 = vpow.pop %v1100
    %v1102 = vadd.f32 %v1101, 1.0
    %v1103 = vrcp.pop %v1102
    %v1104 = vmul.f32 1.0, %v1103
    %v1105 = vtanh.pop %v1098
    %v1106 = vmul.f32 %v1104, %v971
    %1108 = vrot.lane.b32.xlu0 %v1105, 64
    %v1109 = vpop.permute.xlu0 %1108
    %v1111 = vmul.f32 %v1104, %v1109
    %1113 = vrot.lane.b32.xlu0 %v1111, 32
    %v1114 = vpop.permute.xlu0 %1113
    %v1116 = vadd.f32 %v1106, %v1114
    %v1117 = vtanh.pop %v1116
    %1119 = vrot.lane.b32.xlu0 %v1117, 64
    %v1120 = vpop.permute.xlu0 %1119
    %v1122 = vmul.f32 %v1104, %v1120
    %v1123 = vpack.c.bf16 %v1122, %v1122
    %v1124 = vpack.c.bf16 %v1054, %v1054
    %1126 = vrot.lane.b32.xlu0 %v1123, 32
    %v1127 = vpop.permute.xlu0 %1126
    %1129 = vrot.lane.b32.xlu0 %v1124, 64
    %v1130 = vpop.permute.xlu0 %1129
    %v1133 = vsel %vm145, %v1127, %v1130
    %v1134 = vsel %vm259, %v1133, 0
    %1136 = vmatprep.subr.bf16.mxu0 0
    %1137 = vmatpush1.bf16.msra.mxu0 %v251
    %1138 = vmatprep.subr.bf16.mxu0 0
    %1139 = vmatpush1.bf16.msra.mxu0 %v252
    %1140 = vmatprep.subr.bf16.mxu0 0
    %1141 = vmatpush1.bf16.msra.mxu0 %v253
    %1142 = vmatprep.subr.bf16.mxu0 0
    %1143 = vmatpush1.bf16.msra.mxu0 %v254
    %1144 = vmatprep.subr.bf16.mxu0 0
    %1145 = vmatpush1.bf16.msra.mxu0 0
    %1146 = vmatprep.subr.bf16.mxu0 0
    %1147 = vmatpush1.bf16.msra.mxu0 0
    %1148 = vmatprep.subr.bf16.mxu0 0
    %1149 = vmatpush1.bf16.msra.mxu0 0
    %1150 = vmatprep.subr.bf16.mxu0 0
    %1151 = vmatpush1.bf16.msra.mxu0 0
    %1152 = vmatprep.subr.bf16.mxu0 0
    %1153 = vmatpush1.bf16.msra.mxu0 0
    %1154 = vmatprep.subr.bf16.mxu0 0
    %1155 = vmatpush1.bf16.msra.mxu0 0
    %1156 = vmatprep.subr.bf16.mxu0 0
    %1157 = vmatpush1.bf16.msra.mxu0 0
    %1158 = vmatprep.subr.bf16.mxu0 0
    %1159 = vmatpush1.bf16.msra.mxu0 0
    %1160 = vmatprep.subr.bf16.mxu0 0
    %1161 = vmatpush1.bf16.msra.mxu0 0
    %1162 = vmatprep.subr.bf16.mxu0 0
    %1163 = vmatpush1.bf16.msra.mxu0 0
    %1164 = vmatprep.subr.bf16.mxu0 0
    %1165 = vmatpush1.bf16.msra.mxu0 0
    %1166 = vmatprep.subr.bf16.mxu0 0
    %1167 = vmatpush1.bf16.msra.mxu0 0
    %1168 = vmatprep.mubr.bf16.mxu0 0
    %1169 = vmatmul.mubr.bf16.gmra.mrb[0].mxu0 %v1134
    %v1170 = vpop.f32.mrb[0].mxu0
    %v1171 = vadd.f32 %v233, %v1170
    %v1172 = vpop.f32.mrb[0].mxu0
    %v1173 = vpop.f32.mrb[0].mxu0
    %v1174 = vpop.f32.mrb[0].mxu0
    %1175 = vdwg.mxu0
    %v1176 = vxor.u32 %v1171, 2147483648
    %v1177 = vmul.f32 %v1176, 1.442695
    %v1178 = vpow.pop %v1177
    %v1179 = vadd.f32 %v1178, 1.0
    %v1180 = vrcp.pop %v1179
    %v1181 = vmul.f32 1.0, %v1180
    %v1182 = vtanh.pop %v1171
    %v1183 = vmul.f32 %v1181, %v1048
    %1185 = vrot.lane.b32.xlu0 %v1182, 64
    %v1186 = vpop.permute.xlu0 %1185
    %v1188 = vmul.f32 %v1181, %v1186
    %1190 = vrot.lane.b32.xlu0 %v1188, 32
    %v1191 = vpop.permute.xlu0 %1190
    %v1193 = vadd.f32 %v1183, %v1191
    %v1194 = vtanh.pop %v1193
    %1196 = vrot.lane.b32.xlu0 %v1194, 64
    %v1197 = vpop.permute.xlu0 %1196
    %v1199 = vmul.f32 %v1181, %v1197
    %v1200 = vld [vmem:[#allocation2 + $0xe] sm:$0x3]
    %v1201 = vsel %vm145, %v1127, 0
    %1203 = vmatprep.subr.bf16.mxu0 0
    %1204 = vmatpush1.bf16.msra.mxu0 %v141
    %1205 = vmatprep.subr.bf16.mxu0 0
    %1206 = vmatpush1.bf16.msra.mxu0 %v142
    %1207 = vmatprep.subr.bf16.mxu0 0
    %1208 = vmatpush1.bf16.msra.mxu0 0
    %1209 = vmatprep.subr.bf16.mxu0 0
    %1210 = vmatpush1.bf16.msra.mxu0 0
    %1211 = vmatprep.subr.bf16.mxu0 0
    %1212 = vmatpush1.bf16.msra.mxu0 0
    %1213 = vmatprep.subr.bf16.mxu0 0
    %1214 = vmatpush1.bf16.msra.mxu0 0
    %1215 = vmatprep.subr.bf16.mxu0 0
    %1216 = vmatpush1.bf16.msra.mxu0 0
    %1217 = vmatprep.subr.bf16.mxu0 0
    %1218 = vmatpush1.bf16.msra.mxu0 0
    %1219 = vmatprep.subr.bf16.mxu0 0
    %1220 = vmatpush1.bf16.msra.mxu0 0
    %1221 = vmatprep.subr.bf16.mxu0 0
    %1222 = vmatpush1.bf16.msra.mxu0 0
    %1223 = vmatprep.subr.bf16.mxu0 0
    %1224 = vmatpush1.bf16.msra.mxu0 0
    %1225 = vmatprep.subr.bf16.mxu0 0
    %1226 = vmatpush1.bf16.msra.mxu0 0
    %1227 = vmatprep.subr.bf16.mxu0 0
    %1228 = vmatpush1.bf16.msra.mxu0 0
    %1229 = vmatprep.subr.bf16.mxu0 0
    %1230 = vmatpush1.bf16.msra.mxu0 0
    %1231 = vmatprep.subr.bf16.mxu0 0
    %1232 = vmatpush1.bf16.msra.mxu0 0
    %1233 = vmatprep.subr.bf16.mxu0 0
    %1234 = vmatpush1.bf16.msra.mxu0 0
    %1235 = vmatprep.mubr.bf16.mxu0 0
    %1236 = vmatmul.mubr.bf16.gmra.mrb[0].mxu0 %v1201
    %v1237 = vpop.f32.mrb[0].mxu0
    %v1238 = vadd.f32 0.0, %v1237
    %v1239 = vpop.f32.mrb[0].mxu0
    %v1240 = vpop.f32.mrb[0].mxu0
    %v1241 = vpop.f32.mrb[0].mxu0
    %1242 = vdwg.mxu0
    %v1243 = vadd.f32 %v1200, %v1238
    %v1244 = vxor.u32 %v1243, 2147483648
    %v1245 = vmul.f32 %v1244, 1.442695
    %v1246 = vpow.pop %v1245
    %v1247 = vadd.f32 %v1246, 1.0
    %v1248 = vrcp.pop %v1247
    %v1249 = vmul.f32 1.0, %v1248
    %v1250 = vtanh.pop %v1243
    %v1251 = vmul.f32 %v1249, %v1116
    %1253 = vrot.lane.b32.xlu0 %v1250, 64
    %v1254 = vpop.permute.xlu0 %1253
    %v1256 = vmul.f32 %v1249, %v1254
    %1258 = vrot.lane.b32.xlu0 %v1256, 32
    %v1259 = vpop.permute.xlu0 %1258
    %v1261 = vadd.f32 %v1251, %v1259
    %v1262 = vtanh.pop %v1261
    %1264 = vrot.lane.b32.xlu0 %v1262, 64
    %v1265 = vpop.permute.xlu0 %1264
    %v1267 = vmul.f32 %v1249, %v1265
    %v1268 = vpack.c.bf16 %v1267, %v1267
    %v1269 = vpack.c.bf16 %v1199, %v1199
    %1271 = vrot.lane.b32.xlu0 %v1268, 32
    %v1272 = vpop.permute.xlu0 %1271
    %1274 = vrot.lane.b32.xlu0 %v1269, 64
    %v1275 = vpop.permute.xlu0 %1274
    %v1278 = vsel %vm145, %v1272, %v1275
    %v1279 = vsel %vm259, %v1278, 0
    %1281 = vmatprep.subr.bf16.mxu0 0
    %1282 = vmatpush1.bf16.msra.mxu0 %v251
    %1283 = vmatprep.subr.bf16.mxu0 0
    %1284 = vmatpush1.bf16.msra.mxu0 %v252
    %1285 = vmatprep.subr.bf16.mxu0 0
    %1286 = vmatpush1.bf16.msra.mxu0 %v253
    %1287 = vmatprep.subr.bf16.mxu0 0
    %1288 = vmatpush1.bf16.msra.mxu0 %v254
    %1289 = vmatprep.subr.bf16.mxu0 0
    %1290 = vmatpush1.bf16.msra.mxu0 0
    %1291 = vmatprep.subr.bf16.mxu0 0
    %1292 = vmatpush1.bf16.msra.mxu0 0
    %1293 = vmatprep.subr.bf16.mxu0 0
    %1294 = vmatpush1.bf16.msra.mxu0 0
    %1295 = vmatprep.subr.bf16.mxu0 0
    %1296 = vmatpush1.bf16.msra.mxu0 0
    %1297 = vmatprep.subr.bf16.mxu0 0
    %1298 = vmatpush1.bf16.msra.mxu0 0
    %1299 = vmatprep.subr.bf16.mxu0 0
    %1300 = vmatpush1.bf16.msra.mxu0 0
    %1301 = vmatprep.subr.bf16.mxu0 0
    %1302 = vmatpush1.bf16.msra.mxu0 0
    %1303 = vmatprep.subr.bf16.mxu0 0
    %1304 = vmatpush1.bf16.msra.mxu0 0
    %1305 = vmatprep.subr.bf16.mxu0 0
    %1306 = vmatpush1.bf16.msra.mxu0 0
    %1307 = vmatprep.subr.bf16.mxu0 0
    %1308 = vmatpush1.bf16.msra.mxu0 0
    %1309 = vmatprep.subr.bf16.mxu0 0
    %1310 = vmatpush1.bf16.msra.mxu0 0
    %1311 = vmatprep.subr.bf16.mxu0 0
    %1312 = vmatpush1.bf16.msra.mxu0 0
    %1313 = vmatprep.mubr.bf16.mxu0 0
    %1314 = vmatmul.mubr.bf16.gmra.mrb[0].mxu0 %v1279
    %v1315 = vpop.f32.mrb[0].mxu0
    %v1316 = vadd.f32 %v233, %v1315
    %v1317 = vpop.f32.mrb[0].mxu0
    %v1318 = vpop.f32.mrb[0].mxu0
    %v1319 = vpop.f32.mrb[0].mxu0
    %1320 = vdwg.mxu0
    %v1321 = vxor.u32 %v1316, 2147483648
    %v1322 = vmul.f32 %v1321, 1.442695
    %v1323 = vpow.pop %v1322
    %v1324 = vadd.f32 %v1323, 1.0
    %v1325 = vrcp.pop %v1324
    %v1326 = vmul.f32 1.0, %v1325
    %v1327 = vtanh.pop %v1316
    %v1328 = vmul.f32 %v1326, %v1193
    %1330 = vrot.lane.b32.xlu0 %v1327, 64
    %v1331 = vpop.permute.xlu0 %1330
    %v1333 = vmul.f32 %v1326, %v1331
    %1335 = vrot.lane.b32.xlu0 %v1333, 32
    %v1336 = vpop.permute.xlu0 %1335
    %v1338 = vadd.f32 %v1328, %v1336
    %v1339 = vtanh.pop %v1338
    %1341 = vrot.lane.b32.xlu0 %v1339, 64
    %v1342 = vpop.permute.xlu0 %1341
    %v1344 = vmul.f32 %v1326, %v1342
    %1346 = vrot.lane.b32.xlu0 %v1344, 32
    %v1347 = vpop.permute.xlu0 %1346
    %vm1349 = vcmask 254976
    %v1350 = vsel %vm1349, %v1347, 0.0
    %1351 = vadd.xlane.f32.xlu0 %v1350
    %v1352 = vpop.xlane.xlu0 %1351
    %v1353 = vrcp.pop 32.0
    %v1354 = vmul.f32 %v1352, %v1353
    %v1355 = vsub.f32 %v1344, %v1354
    %v1356 = vmul.f32 %v1355, %v1355
    %1358 = vrot.lane.b32.xlu0 %v1356, 32
    %v1359 = vpop.permute.xlu0 %1358
    %v1361 = vsel %vm1349, %v1359, 0.0
    %1362 = vadd.xlane.f32.xlu0 %v1361
    %v1363 = vpop.xlane.xlu0 %1362
    %v1364 = vmul.f32 %v1363, %v1353
    %v1365 = vadd.f32 %v1364, 1e-05
    %v1366 = vrsqrt.pop %v1365
    %v1367 = vmul.f32 %v1355, %v1366
    %v1368 = vld [vmem:[%s8] sm:$0x1]
    %v1370 = vlaneseq
    %v1371 = vshrl.u32 %v1370, 7
    %v1372 = vsub.s32 0, %v1371
    %v1373 = vrot.slane %v1368, %v1372
    %1374 = vrot.lane.b32.xlu0 %v1373, 96
    %v1375 = vpop.permute.xlu0 %1374
    %v1377 = vmul.f32 %v1367, %v1375
    %v1378 = vld [vmem:[%s9] sm:$0x1]
    %v1380 = vlaneseq
    %v1381 = vshrl.u32 %v1380, 7
    %v1382 = vsub.s32 0, %v1381
    %v1383 = vrot.slane %v1378, %v1382
    %1384 = vrot.lane.b32.xlu0 %v1383, 96
    %v1385 = vpop.permute.xlu0 %1384
    %v1387 = vadd.f32 %v1377, %v1385
    %v1388 = vtanh.pop %v1387
    %v1389 = vld [vmem:[%s10] sm:$0xff]
    %v1390 = vld [vmem:[%s10 + $0x8] sm:$0xff]
    %v1391 = vld [vmem:[%s10 + $0x10] sm:$0xff]
    %v1392 = vld [vmem:[%s10 + $0x18] sm:$0xff]
    %v1393 = vld [vmem:[%s11] sm:$0x1]
    %v1395 = vlaneseq
    %v1396 = vshrl.u32 %v1395, 7
    %v1397 = vsub.s32 0, %v1396
    %v1398 = vrot.slane %v1393, %v1397
    %1401 = vrot.lane.b32.xlu0 %v1388, 32
    %v1402 = vpop.permute.xlu0 %1401
    %v1403 = vsel %vm145, %v1402, 0
    %1405 = vmatprep.subr.mxu0 0.0
    %1406 = vmatpush1.msra.mxu0 %v1389
    %1407 = vmatprep.subr.mxu0 0.0
    %1408 = vmatpush1.msra.mxu0 %v1390
    %1409 = vmatprep.subr.mxu0 0.0
    %1410 = vmatpush1.msra.mxu0 %v1391
    %1411 = vmatprep.subr.mxu0 0.0
    %1412 = vmatpush1.msra.mxu0 %v1392
    %1413 = vmatprep.subr.mxu0 0.0
    %1414 = vmatpush1.msra.mxu0 0.0
    %1415 = vmatprep.subr.mxu0 0.0
    %1416 = vmatpush1.msra.mxu0 0.0
    %1417 = vmatprep.subr.mxu0 0.0
    %1418 = vmatpush1.msra.mxu0 0.0
    %1419 = vmatprep.subr.mxu0 0.0
    %1420 = vmatpush1.msra.mxu0 0.0
    %1421 = vmatprep.subr.mxu0 0.0
    %1422 = vmatpush1.msra.mxu0 0.0
    %1423 = vmatprep.subr.mxu0 0.0
    %1424 = vmatpush1.msra.mxu0 0.0
    %1425 = vmatprep.subr.mxu0 0.0
    %1426 = vmatpush1.msra.mxu0 0.0
    %1427 = vmatprep.subr.mxu0 0.0
    %1428 = vmatpush1.msra.mxu0 0.0
    %1429 = vmatprep.subr.mxu0 0.0
    %1430 = vmatpush1.msra.mxu0 0.0
    %1431 = vmatprep.subr.mxu0 0.0
    %1432 = vmatpush1.msra.mxu0 0.0
    %1433 = vmatprep.subr.mxu0 0.0
    %1434 = vmatpush1.msra.mxu0 0.0
    %1435 = vmatprep.subr.mxu0 0.0
    %1436 = vmatpush1.msra.mxu0 0.0
    %1437 = vmatprep.subr.mxu0 0.0
    %1438 = vmatpush1.msra.mxu0 0.0
    %1439 = vmatprep.subr.mxu0 0.0
    %1440 = vmatpush1.msra.mxu0 0.0
    %1441 = vmatprep.subr.mxu0 0.0
    %1442 = vmatpush1.msra.mxu0 0.0
    %1443 = vmatprep.subr.mxu0 0.0
    %1444 = vmatpush1.msra.mxu0 0.0
    %1445 = vmatprep.subr.mxu0 0.0
    %1446 = vmatpush1.msra.mxu0 0.0
    %1447 = vmatprep.subr.mxu0 0.0
    %1448 = vmatpush1.msra.mxu0 0.0
    %1449 = vmatprep.subr.mxu0 0.0
    %1450 = vmatpush1.msra.mxu0 0.0
    %1451 = vmatprep.subr.mxu0 0.0
    %1452 = vmatpush1.msra.mxu0 0.0
    %1453 = vmatprep.subr.mxu0 0.0
    %1454 = vmatpush1.msra.mxu0 0.0
    %1455 = vmatprep.subr.mxu0 0.0
    %1456 = vmatpush1.msra.mxu0 0.0
    %1457 = vmatprep.subr.mxu0 0.0
    %1458 = vmatpush1.msra.mxu0 0.0
    %1459 = vmatprep.subr.mxu0 0.0
    %1460 = vmatpush1.msra.mxu0 0.0
    %1461 = vmatprep.subr.mxu0 0.0
    %1462 = vmatpush1.msra.mxu0 0.0
    %1463 = vmatprep.subr.mxu0 0.0
    %1464 = vmatpush1.msra.mxu0 0.0
    %1465 = vmatprep.subr.mxu0 0.0
    %1466 = vmatpush1.msra.mxu0 0.0
    %1467 = vmatprep.subr.mxu0 0.0
    %1468 = vmatpush1.msra.mxu0 0.0
    %1469 = vmatprep.mubr.f32.mxu0 0.0
    %1470 = vmatmul.mubr.f32.gmra.mrb[0].mxu0 %v1403
    %v1471 = vpop.f32.mrb[0].mxu0
    %v1472 = vadd.f32 %v1398, %v1471
    %v1473 = vpop.f32.mrb[0].mxu0
    %1474 = vdwg.mxu0
    %vm1475 = vcmask 9216
    %1476 = vst.msk [vmem:[#allocation3] sm:$0x3] %vm1475, %v1472
    // Predicated region
    $region50: #{mylstm_forward.1} parent=1 // pred_check
      _
    $region51: #{mylstm_forward.1} parent=1 // pred_check_branch
      %1478 = sbr.rel (0) target = $region53
    $region52: #{mylstm_forward.1} parent=1 // pred_region
      %s1480 = ssub.s32 32, 32
      %1481 = vsyncadd [#allocation4], %s1480
      %s1483 = sshll.u32 [#allocation3], 4
      %s1484 = int_to_ptr.vmem [resolvable:$true] %s1483
      %1486 = dma.vmem_to_hbm [thread:$0]  %s1484, 32, %s12, [#allocation4]
    $region53: #{mylstm_forward.1} parent=1 // pred_fallthru
      _
    // Predicated region
    $region54: #{mylstm_forward.1} parent=1 // pred_check
      _
    $region55: #{mylstm_forward.1} parent=1 // pred_check_branch
      %1488 = sbr.rel (0) target = $region57
    $region56: #{mylstm_forward.1} parent=1 // pred_region
      %1489 = dma.done [#allocation4], 32
    $region57: #{mylstm_forward.1} parent=1 // pred_fallthru
      _
    %1490 = vsyncpa [#allocation4], 1

</llo_original>
